<compile_context>
chip_gen: v5e
topology: v5e:2x2
jax: 0.10.0
libtpu: 0.0.40
codegen_flags: <defaults>
</compile_context>

<pallas_src>
import functools

import jax
import jax.numpy as jnp
import numpy as np
from jax import lax
from jax.experimental import pallas as pl
from jax.experimental.pallas import tpu as pltpu

LN_EPS = 1e-6  # Block passes eps=1e-06 to norm1 / norm2


def _layernorm(x, w, b, eps=LN_EPS):
    mu = jnp.mean(x, axis=-1, keepdims=True)
    var = jnp.mean(jnp.square(x - mu), axis=-1, keepdims=True)
    return (x - mu) * lax.rsqrt(var + eps) * w + b


def _erf(z):
    # Abramowitz & Stegun 7.1.26, |error| <= 1.5e-7; only exp/div/mul/add/select
    # (guaranteed Mosaic lowering).
    az = jnp.abs(z)
    t = 1.0 / (1.0 + 0.3275911 * az)
    poly = ((((1.061405429 * t - 1.453152027) * t + 1.421413741) * t
             - 0.284496736) * t + 0.254829592) * t
    y = 1.0 - poly * jnp.exp(-az * az)
    return jnp.where(z >= 0.0, y, -y)


def _gelu_exact(x):
    # TODO(synk): on v6e/v7x a tanh-approx (EUP) or bf16 polynomial would move this
    #             off the f32 VALU; kept exact-erf in f32 for semantic fidelity.
    return 0.5 * x * (1.0 + _erf(x * 0.7071067811865476))


def block_kernel(x_ref,
                 ln1_w_ref, ln1_b_ref,
                 wqkv_ref, bqkv_ref,
                 wp_ref, bp_ref,
                 ln2_w_ref, ln2_b_ref,
                 w1_ref, b1_ref,
                 w2_ref, b2_ref,
                 o_ref,
                 acc_ref,
                 *, head_dim, heads_per_group, num_groups, n_hidden_chunks):
    GW = heads_per_group * head_dim
    x = x_ref[0]                                               # [N, C] f32

    # ---- norm1 ----
    h1 = _layernorm(x, ln1_w_ref[...], ln1_b_ref[...])
    hb = h1.astype(jnp.bfloat16)

    # residual-1 accumulator; proj bias folded into the init so it's added once.
    acc_ref[...] = x + bp_ref[...]

    # ---- attention: fori_loop over lane-aligned head groups ----
    # Each iteration keeps only this group's [N,N] score/prob transients live,
    # the QKV projection contracts over full C, and the output projection is
    # accumulated with a [GW, C] weight slab (no masked scratch stores).
    def group_body(g, carry):
        qkv = jnp.dot(hb, wqkv_ref[g],
                      preferred_element_type=jnp.float32) + bqkv_ref[g]   # [N, 3*GW] f32
        qkv = qkv.astype(jnp.bfloat16)
        outs = []
        for hh in range(heads_per_group):                      # static, tiny (1-2 heads)
            q_h = qkv[:, hh * head_dim:(hh + 1) * head_dim]
            k_h = qkv[:, GW + hh * head_dim: GW + (hh + 1) * head_dim]
            v_h = qkv[:, 2 * GW + hh * head_dim: 2 * GW + (hh + 1) * head_dim]
            s = lax.dot_general(q_h, k_h, (((1,), (1,)), ((), ())),
                                preferred_element_type=jnp.float32)       # [N, N] f32
            s = s - jnp.max(s, axis=-1, keepdims=True)
            p = jnp.exp(s)
            p = p * pl.reciprocal(jnp.sum(p, axis=-1, keepdims=True), approx=True)
            outs.append(jnp.dot(p.astype(jnp.bfloat16), v_h,
                                preferred_element_type=jnp.float32))      # [N, hd] f32
        group_out = outs[0] if heads_per_group == 1 else jnp.concatenate(outs, axis=1)
        # Per-group output projection accumulation (Wp rows reordered/split on host).
        acc_ref[...] += jnp.dot(group_out.astype(jnp.bfloat16), wp_ref[g],
                                preferred_element_type=jnp.float32)
        return carry

    lax.fori_loop(0, num_groups, group_body, 0)

    # ---- norm2 + MLP tiled over hidden chunks (fc1 -> exact GELU -> fc2) ----
    x1 = acc_ref[...]                                           # x + attn_out, f32
    h2b = _layernorm(x1, ln2_w_ref[...], ln2_b_ref[...]).astype(jnp.bfloat16)

    def mlp_body(j, carry):
        z = jnp.dot(h2b, w1_ref[j],
                    preferred_element_type=jnp.float32) + b1_ref[j]       # [N, HC] f32
        z = _gelu_exact(z)
        acc_ref[...] += jnp.dot(z.astype(jnp.bfloat16), w2_ref[j],
                                preferred_element_type=jnp.float32)
        return carry

    lax.fori_loop(0, n_hidden_chunks, mlp_body, 0)

    o_ref[0] = (acc_ref[...] + b2_ref[...]).astype(o_ref.dtype)


def block_forward(x, params, num_heads):
    B, N, C = x.shape
    H = num_heads
    hd = C // H
    hidden = params["W1"].shape[0]
    scale = hd ** -0.5

    # Head grouping: group width = hpg*hd lanes (128 at production hd=64) so group
    # slices / projection slabs sit at lane-dense, 128-multiple boundaries.
    hpg = max(1, min(H, 128 // max(hd, 1)))
    while H % hpg:
        hpg -= 1
    GW = hpg * hd
    num_groups = H // hpg

    # Hidden-dim chunking for the MLP (caps the [N, HC] transient).
    HC = min(hidden, 512)
    while hidden % HC:
        HC -= 1
    n_hc = hidden // HC

    f32, bf16 = jnp.float32, jnp.bfloat16

    # Host-side layout plumbing: pre-transpose weights, fold the softmax scale into
    # Wq/bq (before the bf16 cast), split into head-group / hidden-chunk slabs, and
    # cast matmul weights to bf16 (halves resident weight VMEM; f32 accumulation).
    Wq_t = (params["Wq"] * scale).T.astype(f32)
    Wk_t = params["Wk"].T.astype(f32)
    Wv_t = params["Wv"].T.astype(f32)
    bq_s = (params["bq"] * scale).astype(f32)

    def gcols(m, g):
        return m[:, g * GW:(g + 1) * GW]

    w_qkv = jnp.stack(
        [jnp.concatenate([gcols(Wq_t, g), gcols(Wk_t, g), gcols(Wv_t, g)], axis=1)
         for g in range(num_groups)], axis=0).astype(bf16)                 # [G, C, 3GW]
    b_qkv = jnp.stack(
        [jnp.concatenate([bq_s[g * GW:(g + 1) * GW],
                          params["bk"][g * GW:(g + 1) * GW],
                          params["bv"][g * GW:(g + 1) * GW]])
         for g in range(num_groups)],
        axis=0).reshape(num_groups, 1, 3 * GW).astype(f32)                 # [G, 1, 3GW]
    w_p = params["Wp"].T.reshape(num_groups, GW, C).astype(bf16)           # [G, GW, C]
    b_p = params["bp"].reshape(1, C).astype(f32)
    W1_t = params["W1"].T                                                  # [C, hidden]
    w_1 = jnp.stack([W1_t[:, j * HC:(j + 1) * HC] for j in range(n_hc)],
                    axis=0).astype(bf16)                                   # [n_hc, C, HC]
    b_1 = params["b1"].reshape(n_hc, 1, HC).astype(f32)
    w_2 = params["W2"].T.reshape(n_hc, HC, C).astype(bf16)                 # [n_hc, HC, C]
    b_2 = params["b2"].reshape(1, C).astype(f32)
    ln1_w = params["ln1_w"].reshape(1, C).astype(f32)
    ln1_b = params["ln1_b"].reshape(1, C).astype(f32)
    ln2_w = params["ln2_w"].reshape(1, C).astype(f32)
    ln2_b = params["ln2_b"].reshape(1, C).astype(f32)

    weights = (ln1_w, ln1_b, w_qkv, b_qkv, w_p, b_p, ln2_w, ln2_b, w_1, b_1, w_2, b_2)

    # Whole-array VMEM operands: resident and single-buffered (no pipeline buffers).
    vmem_ws = pl.BlockSpec(memory_space=pltpu.MemorySpace.VMEM)

    # ---- explicit VMEM budget ----
    weight_bytes = sum(int(np.prod(a.shape)) * a.dtype.itemsize for a in weights)
    transient_bytes = (4 * N * 3 * GW * 4        # per-group QKV (f32 + bf16 copy, slack)
                       + 3 * hpg * N * N * 4     # per-group score/prob transients
                       + 4 * N * HC * 4          # per-chunk MLP activation
                       + 3 * N * C * 4)          # LN / residual temporaries
    needed = (weight_bytes
              + 2 * 2 * N * C * 4                # double-buffered x / out blocks
              + N * C * 4                        # f32 accumulator scratch
              + transient_bytes)
    try:
        phys_vmem = pltpu.get_tpu_info().vmem_capacity_bytes
    except Exception:
        phys_vmem = 64 * 1024 * 1024
    vmem_limit = int(min(phys_vmem - (2 << 20), max(needed * 3 // 2, 16 << 20)))

    # ---- advisory cost estimate for XLA scheduling ----
    flops = B * (2 * N * C * 3 * C          # QKV projection
                 + 4 * H * N * N * hd       # QK^T + PV
                 + 2 * N * C * C            # output projection
                 + 4 * N * C * hidden)      # fc1 + fc2
    transcendentals = B * (H * N * N + 2 * N * hidden)
    bytes_accessed = 2 * B * N * C * 4 + weight_bytes

    out = pl.pallas_call(
        functools.partial(block_kernel, head_dim=hd, heads_per_group=hpg,
                          num_groups=num_groups, n_hidden_chunks=n_hc),
        out_shape=jax.ShapeDtypeStruct((B, N, C), x.dtype),
        grid=(B,),
        in_specs=[
            pl.BlockSpec((1, N, C), lambda b: (b, 0, 0)),   # x (pipelined per batch)
            vmem_ws, vmem_ws,                               # norm1 w, b
            vmem_ws, vmem_ws,                               # grouped qkv weight, bias
            vmem_ws, vmem_ws,                               # grouped proj weight, bias
            vmem_ws, vmem_ws,                               # norm2 w, b
            vmem_ws, vmem_ws,                               # fc1 chunks, bias chunks
            vmem_ws, vmem_ws,                               # fc2 chunks, bias
        ],
        out_specs=pl.BlockSpec((1, N, C), lambda b: (b, 0, 0)),
        scratch_shapes=[pltpu.VMEM((N, C), jnp.float32)],   # residual/proj/MLP accumulator
        compiler_params=pltpu.CompilerParams(
            dimension_semantics=("parallel",),
            vmem_limit_bytes=vmem_limit),
        cost_estimate=pl.CostEstimate(flops=int(flops),
                                      transcendentals=int(transcendentals),
                                      bytes_accessed=int(bytes_accessed)),
    )(x, *weights)
    return out


def ref_block_forward(x, params, num_heads):
    """Pure-JAX reference matching Block.forward(x) with default config."""
    B, N, C = x.shape
    H = num_heads
    hd = C // H

    def ln(t, w, b, eps):
        mu = t.mean(-1, keepdims=True)
        var = ((t - mu) ** 2).mean(-1, keepdims=True)
        return (t - mu) / jnp.sqrt(var + eps) * w + b

    h = ln(x, params["ln1_w"], params["ln1_b"], LN_EPS)    # q = k = v = norm1(x)
    q = h @ params["Wq"].T + params["bq"]
    k = h @ params["Wk"].T + params["bk"]
    v = h @ params["Wv"].T + params["bv"]

    def split(t):
        return jnp.transpose(t.reshape(B, N, H, hd), (0, 2, 1, 3))

    qh, kh, vh = split(q), split(k), split(v)
    s = jnp.einsum("bhqd,bhkd->bhqk", qh * (hd ** -0.5), kh)
    p = jax.nn.softmax(s, axis=-1)
    xh = jnp.einsum("bhqk,bhkd->bhqd", p, vh)
    xh = jnp.transpose(xh, (0, 2, 1, 3)).reshape(B, N, C)
    attn_out = xh @ params["Wp"].T + params["bp"]
    x1 = x + attn_out

    h2 = ln(x1, params["ln2_w"], params["ln2_b"], LN_EPS)
    z = jax.nn.gelu(h2 @ params["W1"].T + params["b1"], approximate=False)
    mlp_out = z @ params["W2"].T + params["b2"]
    return x1 + mlp_out


if __name__ == "__main__":
    B, N, dim, num_heads, mlp_ratio = 2, 8, 32, 4, 4.0
    hidden = int(dim * mlp_ratio)

    key = jax.random.PRNGKey(0)
    keys = jax.random.split(key, 20)

    x = jax.random.normal(keys[0], (B, N, dim), dtype=jnp.float32)

    params = {
        # LayerNorms (eps=1e-6, affine)
        "ln1_w": 1.0 + 0.1 * jax.random.normal(keys[1], (dim,), jnp.float32),
        "ln1_b": 0.1 * jax.random.normal(keys[2], (dim,), jnp.float32),
        "ln2_w": 1.0 + 0.1 * jax.random.normal(keys[3], (dim,), jnp.float32),
        "ln2_b": 0.1 * jax.random.normal(keys[4], (dim,), jnp.float32),
        # Attention (qkv_bias=True, qkv_norm=False); nn.Linear weights are [out, in]
        "Wq": 0.1 * jax.random.normal(keys[5], (dim, dim), jnp.float32),
        "bq": 0.1 * jax.random.normal(keys[6], (dim,), jnp.float32),
        "Wk": 0.1 * jax.random.normal(keys[7], (dim, dim), jnp.float32),
        "bk": 0.1 * jax.random.normal(keys[8], (dim,), jnp.float32),
        "Wv": 0.1 * jax.random.normal(keys[9], (dim, dim), jnp.float32),
        "bv": 0.1 * jax.random.normal(keys[10], (dim,), jnp.float32),
        "Wp": 0.1 * jax.random.normal(keys[11], (dim, dim), jnp.float32),
        "bp": 0.1 * jax.random.normal(keys[12], (dim,), jnp.float32),
        # MLP (fc1: dim->hidden, fc2: hidden->dim, exact GELU)
        "W1": 0.1 * jax.random.normal(keys[13], (hidden, dim), jnp.float32),
        "b1": 0.1 * jax.random.normal(keys[14], (hidden,), jnp.float32),
        "W2": 0.1 * jax.random.normal(keys[15], (dim, hidden), jnp.float32),
        "b2": 0.1 * jax.random.normal(keys[16], (dim,), jnp.float32),
    }

    out = jax.block_until_ready(block_forward(x, params, num_heads))

    with jax.default_matmul_precision("highest"):   # scoped, not a global side effect
        ref = jax.block_until_ready(ref_block_forward(x, params, num_heads))

    # bf16 MXU operands + EUP approx reciprocal + erf polynomial -> ~1e-3-level error.
    np.testing.assert_allclose(np.asarray(out), np.asarray(ref), rtol=2e-2, atol=2e-2)

    print("KERNEL_OK")
</pallas_src>

<mosaic_0001>
module attributes {stable_mosaic.version = 11 : i64} {
  func.func @block_kernel(%arg0: i32, %arg1: memref<1x8x32xf32, #tpu.memory_space<vmem>>, %arg2: memref<1x32xf32, #tpu.memory_space<vmem>>, %arg3: memref<1x32xf32, #tpu.memory_space<vmem>>, %arg4: memref<1x32x96xbf16, #tpu.memory_space<vmem>>, %arg5: memref<1x1x96xf32, #tpu.memory_space<vmem>>, %arg6: memref<1x32x32xbf16, #tpu.memory_space<vmem>>, %arg7: memref<1x32xf32, #tpu.memory_space<vmem>>, %arg8: memref<1x32xf32, #tpu.memory_space<vmem>>, %arg9: memref<1x32xf32, #tpu.memory_space<vmem>>, %arg10: memref<1x32x128xbf16, #tpu.memory_space<vmem>>, %arg11: memref<1x1x128xf32, #tpu.memory_space<vmem>>, %arg12: memref<1x128x32xbf16, #tpu.memory_space<vmem>>, %arg13: memref<1x32xf32, #tpu.memory_space<vmem>>, %arg14: memref<1x8x32xf32, #tpu.memory_space<vmem>>, %arg15: memref<8x32xf32, #tpu.memory_space<vmem>>) attributes {dimension_semantics = [#tpu.dimension_semantics<parallel>], iteration_bounds = array<i64: 2>, scalar_prefetch = 0 : i64, scratch_operands = 1 : i64, tpu.core_type = #tpu.core_type<tc>, window_params = [{transform_indices = @transform_0, window_bounds = array<i64: 1, 8, 32>}, {pipeline_mode = #tpu.pipeline_mode<synchronous>, transform_indices = @transform_1, window_bounds = array<i64: 1, 32>}, {pipeline_mode = #tpu.pipeline_mode<synchronous>, transform_indices = @transform_2, window_bounds = array<i64: 1, 32>}, {pipeline_mode = #tpu.pipeline_mode<synchronous>, transform_indices = @transform_3, window_bounds = array<i64: 1, 32, 96>}, {pipeline_mode = #tpu.pipeline_mode<synchronous>, transform_indices = @transform_4, window_bounds = array<i64: 1, 1, 96>}, {pipeline_mode = #tpu.pipeline_mode<synchronous>, transform_indices = @transform_5, window_bounds = array<i64: 1, 32, 32>}, {pipeline_mode = #tpu.pipeline_mode<synchronous>, transform_indices = @transform_6, window_bounds = array<i64: 1, 32>}, {pipeline_mode = #tpu.pipeline_mode<synchronous>, transform_indices = @transform_7, window_bounds = array<i64: 1, 32>}, {pipeline_mode = #tpu.pipeline_mode<synchronous>, transform_indices = @transform_8, window_bounds = array<i64: 1, 32>}, {pipeline_mode = #tpu.pipeline_mode<synchronous>, transform_indices = @transform_9, window_bounds = array<i64: 1, 32, 128>}, {pipeline_mode = #tpu.pipeline_mode<synchronous>, transform_indices = @transform_10, window_bounds = array<i64: 1, 1, 128>}, {pipeline_mode = #tpu.pipeline_mode<synchronous>, transform_indices = @transform_11, window_bounds = array<i64: 1, 128, 32>}, {pipeline_mode = #tpu.pipeline_mode<synchronous>, transform_indices = @transform_12, window_bounds = array<i64: 1, 32>}, {transform_indices = @transform_13, window_bounds = array<i64: 1, 8, 32>}]} {
    %c0 = arith.constant 0 : index
    %c0_0 = arith.constant 0 : index
    %c0_1 = arith.constant 0 : index
    %0 = vector.load %arg1[%c0, %c0_0, %c0_1] : memref<1x8x32xf32, #tpu.memory_space<vmem>>, vector<1x8x32xf32>
    %1 = vector.shape_cast %0 : vector<1x8x32xf32> to vector<8x32xf32>
    %c0_2 = arith.constant 0 : index
    %c0_3 = arith.constant 0 : index
    %2 = vector.load %arg2[%c0_2, %c0_3] : memref<1x32xf32, #tpu.memory_space<vmem>>, vector<1x32xf32>
    %c0_4 = arith.constant 0 : index
    %c0_5 = arith.constant 0 : index
    %3 = vector.load %arg3[%c0_4, %c0_5] : memref<1x32xf32, #tpu.memory_space<vmem>>, vector<1x32xf32>
    %cst = arith.constant dense<0.000000e+00> : vector<8xf32>
    %4 = vector.multi_reduction <add>, %1, %cst [1] : vector<8x32xf32> to vector<8xf32>
    %5 = vector.shape_cast %4 : vector<8xf32> to vector<8x1xf32>
    %cst_6 = arith.constant 3.200000e+01 : f32
    %6 = vector.broadcast %cst_6 : f32 to vector<8x1xf32>
    %7 = arith.divf %5, %6 : vector<8x1xf32>
    %8 = vector.broadcast %7 : vector<8x1xf32> to vector<8x32xf32>
    %9 = arith.subf %1, %8 : vector<8x32xf32>
    %10 = arith.mulf %9, %9 : vector<8x32xf32>
    %cst_7 = arith.constant dense<0.000000e+00> : vector<8xf32>
    %11 = vector.multi_reduction <add>, %10, %cst_7 [1] : vector<8x32xf32> to vector<8xf32>
    %12 = vector.shape_cast %11 : vector<8xf32> to vector<8x1xf32>
    %cst_8 = arith.constant 3.200000e+01 : f32
    %13 = vector.broadcast %cst_8 : f32 to vector<8x1xf32>
    %14 = arith.divf %12, %13 : vector<8x1xf32>
    %15 = vector.broadcast %7 : vector<8x1xf32> to vector<8x32xf32>
    %16 = arith.subf %1, %15 : vector<8x32xf32>
    %cst_9 = arith.constant 9.99999997E-7 : f32
    %17 = vector.broadcast %cst_9 : f32 to vector<8x1xf32>
    %18 = arith.addf %14, %17 : vector<8x1xf32>
    %19 = math.rsqrt %18 : vector<8x1xf32>
    %20 = vector.broadcast %19 : vector<8x1xf32> to vector<8x32xf32>
    %21 = arith.mulf %16, %20 : vector<8x32xf32>
    %22 = vector.broadcast %2 : vector<1x32xf32> to vector<8x32xf32>
    %23 = arith.mulf %21, %22 : vector<8x32xf32>
    %24 = vector.broadcast %3 : vector<1x32xf32> to vector<8x32xf32>
    %25 = arith.addf %23, %24 : vector<8x32xf32>
    %26 = arith.truncf %25 : vector<8x32xf32> to vector<8x32xbf16>
    %c0_10 = arith.constant 0 : index
    %c0_11 = arith.constant 0 : index
    %27 = vector.load %arg7[%c0_10, %c0_11] : memref<1x32xf32, #tpu.memory_space<vmem>>, vector<1x32xf32>
    %28 = vector.broadcast %27 : vector<1x32xf32> to vector<8x32xf32>
    %29 = arith.addf %1, %28 : vector<8x32xf32>
    %c0_12 = arith.constant 0 : index
    %c0_13 = arith.constant 0 : index
    %30 = vector.load %arg15[%c0_12, %c0_13] : memref<8x32xf32, #tpu.memory_space<vmem>>, vector<8x32xf32>
    tpu.vector_store %arg15[%c0_12, %c0_13], %29 {strides = array<i32>} : memref<8x32xf32, #tpu.memory_space<vmem>>, vector<8x32xf32>,
    %c0_i32 = arith.constant 0 : i32
    %31 = arith.index_cast %c0_i32 : i32 to index
    %c0_14 = arith.constant 0 : index
    %c0_15 = arith.constant 0 : index
    %32 = vector.load %arg4[%31, %c0_14, %c0_15] : memref<1x32x96xbf16, #tpu.memory_space<vmem>>, vector<1x32x96xbf16>
    %33 = vector.shape_cast %32 : vector<1x32x96xbf16> to vector<32x96xbf16>
    %cst_16 = arith.constant dense<0.000000e+00> : vector<8x96xf32>
    %34 = tpu.matmul %26, %33, %cst_16 {dimension_numbers = #tpu.dot_dimension_numbers<[1], [0], [0], [1], [0, 0, 1, 1], [], []>} : vector<8x32xbf16>, vector<32x96xbf16>, vector<8x96xf32> -> vector<8x96xf32>
    %35 = arith.index_cast %c0_i32 : i32 to index
    %c0_17 = arith.constant 0 : index
    %c0_18 = arith.constant 0 : index
    %36 = vector.load %arg5[%35, %c0_17, %c0_18] : memref<1x1x96xf32, #tpu.memory_space<vmem>>, vector<1x1x96xf32>
    %37 = vector.shape_cast %36 : vector<1x1x96xf32> to vector<1x96xf32>
    %38 = vector.broadcast %37 : vector<1x96xf32> to vector<8x96xf32>
    %39 = arith.addf %34, %38 : vector<8x96xf32>
    %40 = arith.truncf %39 : vector<8x96xf32> to vector<8x96xbf16>
    %41 = vector.extract_strided_slice %40 {offsets = [0, 0], sizes = [8, 8], strides = [1, 1]} : vector<8x96xbf16> to vector<8x8xbf16>
    %42 = vector.extract_strided_slice %40 {offsets = [0, 32], sizes = [8, 8], strides = [1, 1]} : vector<8x96xbf16> to vector<8x8xbf16>
    %43 = vector.extract_strided_slice %40 {offsets = [0, 64], sizes = [8, 8], strides = [1, 1]} : vector<8x96xbf16> to vector<8x8xbf16>
    %cst_19 = arith.constant dense<0.000000e+00> : vector<8x8xf32>
    %44 = tpu.matmul %41, %42, %cst_19 {dimension_numbers = #tpu.dot_dimension_numbers<[1], [1], [0], [0], [0, 0, 1, 0], [], []>} : vector<8x8xbf16>, vector<8x8xbf16>, vector<8x8xf32> -> vector<8x8xf32>
    %cst_20 = arith.constant dense<0xFF800000> : vector<8xf32>
    %45 = vector.multi_reduction <maximumf>, %44, %cst_20 [1] : vector<8x8xf32> to vector<8xf32>
    %46 = vector.shape_cast %45 : vector<8xf32> to vector<8x1xf32>
    %47 = vector.broadcast %46 : vector<8x1xf32> to vector<8x8xf32>
    %48 = arith.subf %44, %47 : vector<8x8xf32>
    %49 = math.exp %48 : vector<8x8xf32>
    %cst_21 = arith.constant dense<0.000000e+00> : vector<8xf32>
    %50 = vector.multi_reduction <add>, %49, %cst_21 [1] : vector<8x8xf32> to vector<8xf32>
    %51 = vector.shape_cast %50 : vector<8xf32> to vector<8x1xf32>
    %52 = tpu.reciprocal %51 {approx = true} : vector<8x1xf32> -> vector<8x1xf32>
    %53 = vector.broadcast %52 : vector<8x1xf32> to vector<8x8xf32>
    %54 = arith.mulf %49, %53 : vector<8x8xf32>
    %55 = arith.truncf %54 : vector<8x8xf32> to vector<8x8xbf16>
    %cst_22 = arith.constant dense<0.000000e+00> : vector<8x8xf32>
    %56 = tpu.matmul %55, %43, %cst_22 {dimension_numbers = #tpu.dot_dimension_numbers<[1], [0], [0], [1], [0, 0, 1, 1], [], []>} : vector<8x8xbf16>, vector<8x8xbf16>, vector<8x8xf32> -> vector<8x8xf32>
    %57 = vector.extract_strided_slice %40 {offsets = [0, 8], sizes = [8, 8], strides = [1, 1]} : vector<8x96xbf16> to vector<8x8xbf16>
    %58 = vector.extract_strided_slice %40 {offsets = [0, 40], sizes = [8, 8], strides = [1, 1]} : vector<8x96xbf16> to vector<8x8xbf16>
    %59 = vector.extract_strided_slice %40 {offsets = [0, 72], sizes = [8, 8], strides = [1, 1]} : vector<8x96xbf16> to vector<8x8xbf16>
    %cst_23 = arith.constant dense<0.000000e+00> : vector<8x8xf32>
    %60 = tpu.matmul %57, %58, %cst_23 {dimension_numbers = #tpu.dot_dimension_numbers<[1], [1], [0], [0], [0, 0, 1, 0], [], []>} : vector<8x8xbf16>, vector<8x8xbf16>, vector<8x8xf32> -> vector<8x8xf32>
    %cst_24 = arith.constant dense<0xFF800000> : vector<8xf32>
    %61 = vector.multi_reduction <maximumf>, %60, %cst_24 [1] : vector<8x8xf32> to vector<8xf32>
    %62 = vector.shape_cast %61 : vector<8xf32> to vector<8x1xf32>
    %63 = vector.broadcast %62 : vector<8x1xf32> to vector<8x8xf32>
    %64 = arith.subf %60, %63 : vector<8x8xf32>
    %65 = math.exp %64 : vector<8x8xf32>
    %cst_25 = arith.constant dense<0.000000e+00> : vector<8xf32>
    %66 = vector.multi_reduction <add>, %65, %cst_25 [1] : vector<8x8xf32> to vector<8xf32>
    %67 = vector.shape_cast %66 : vector<8xf32> to vector<8x1xf32>
    %68 = tpu.reciprocal %67 {approx = true} : vector<8x1xf32> -> vector<8x1xf32>
    %69 = vector.broadcast %68 : vector<8x1xf32> to vector<8x8xf32>
    %70 = arith.mulf %65, %69 : vector<8x8xf32>
    %71 = arith.truncf %70 : vector<8x8xf32> to vector<8x8xbf16>
    %cst_26 = arith.constant dense<0.000000e+00> : vector<8x8xf32>
    %72 = tpu.matmul %71, %59, %cst_26 {dimension_numbers = #tpu.dot_dimension_numbers<[1], [0], [0], [1], [0, 0, 1, 1], [], []>} : vector<8x8xbf16>, vector<8x8xbf16>, vector<8x8xf32> -> vector<8x8xf32>
    %73 = vector.extract_strided_slice %40 {offsets = [0, 16], sizes = [8, 8], strides = [1, 1]} : vector<8x96xbf16> to vector<8x8xbf16>
    %74 = vector.extract_strided_slice %40 {offsets = [0, 48], sizes = [8, 8], strides = [1, 1]} : vector<8x96xbf16> to vector<8x8xbf16>
    %75 = vector.extract_strided_slice %40 {offsets = [0, 80], sizes = [8, 8], strides = [1, 1]} : vector<8x96xbf16> to vector<8x8xbf16>
    %cst_27 = arith.constant dense<0.000000e+00> : vector<8x8xf32>
    %76 = tpu.matmul %73, %74, %cst_27 {dimension_numbers = #tpu.dot_dimension_numbers<[1], [1], [0], [0], [0, 0, 1, 0], [], []>} : vector<8x8xbf16>, vector<8x8xbf16>, vector<8x8xf32> -> vector<8x8xf32>
    %cst_28 = arith.constant dense<0xFF800000> : vector<8xf32>
    %77 = vector.multi_reduction <maximumf>, %76, %cst_28 [1] : vector<8x8xf32> to vector<8xf32>
    %78 = vector.shape_cast %77 : vector<8xf32> to vector<8x1xf32>
    %79 = vector.broadcast %78 : vector<8x1xf32> to vector<8x8xf32>
    %80 = arith.subf %76, %79 : vector<8x8xf32>
    %81 = math.exp %80 : vector<8x8xf32>
    %cst_29 = arith.constant dense<0.000000e+00> : vector<8xf32>
    %82 = vector.multi_reduction <add>, %81, %cst_29 [1] : vector<8x8xf32> to vector<8xf32>
    %83 = vector.shape_cast %82 : vector<8xf32> to vector<8x1xf32>
    %84 = tpu.reciprocal %83 {approx = true} : vector<8x1xf32> -> vector<8x1xf32>
    %85 = vector.broadcast %84 : vector<8x1xf32> to vector<8x8xf32>
    %86 = arith.mulf %81, %85 : vector<8x8xf32>
    %87 = arith.truncf %86 : vector<8x8xf32> to vector<8x8xbf16>
    %cst_30 = arith.constant dense<0.000000e+00> : vector<8x8xf32>
    %88 = tpu.matmul %87, %75, %cst_30 {dimension_numbers = #tpu.dot_dimension_numbers<[1], [0], [0], [1], [0, 0, 1, 1], [], []>} : vector<8x8xbf16>, vector<8x8xbf16>, vector<8x8xf32> -> vector<8x8xf32>
    %89 = vector.extract_strided_slice %40 {offsets = [0, 24], sizes = [8, 8], strides = [1, 1]} : vector<8x96xbf16> to vector<8x8xbf16>
    %90 = vector.extract_strided_slice %40 {offsets = [0, 56], sizes = [8, 8], strides = [1, 1]} : vector<8x96xbf16> to vector<8x8xbf16>
    %91 = vector.extract_strided_slice %40 {offsets = [0, 88], sizes = [8, 8], strides = [1, 1]} : vector<8x96xbf16> to vector<8x8xbf16>
    %cst_31 = arith.constant dense<0.000000e+00> : vector<8x8xf32>
    %92 = tpu.matmul %89, %90, %cst_31 {dimension_numbers = #tpu.dot_dimension_numbers<[1], [1], [0], [0], [0, 0, 1, 0], [], []>} : vector<8x8xbf16>, vector<8x8xbf16>, vector<8x8xf32> -> vector<8x8xf32>
    %cst_32 = arith.constant dense<0xFF800000> : vector<8xf32>
    %93 = vector.multi_reduction <maximumf>, %92, %cst_32 [1] : vector<8x8xf32> to vector<8xf32>
    %94 = vector.shape_cast %93 : vector<8xf32> to vector<8x1xf32>
    %95 = vector.broadcast %94 : vector<8x1xf32> to vector<8x8xf32>
    %96 = arith.subf %92, %95 : vector<8x8xf32>
    %97 = math.exp %96 : vector<8x8xf32>
    %cst_33 = arith.constant dense<0.000000e+00> : vector<8xf32>
    %98 = vector.multi_reduction <add>, %97, %cst_33 [1] : vector<8x8xf32> to vector<8xf32>
    %99 = vector.shape_cast %98 : vector<8xf32> to vector<8x1xf32>
    %100 = tpu.reciprocal %99 {approx = true} : vector<8x1xf32> -> vector<8x1xf32>
    %101 = vector.broadcast %100 : vector<8x1xf32> to vector<8x8xf32>
    %102 = arith.mulf %97, %101 : vector<8x8xf32>
    %103 = arith.truncf %102 : vector<8x8xf32> to vector<8x8xbf16>
    %cst_34 = arith.constant dense<0.000000e+00> : vector<8x8xf32>
    %104 = tpu.matmul %103, %91, %cst_34 {dimension_numbers = #tpu.dot_dimension_numbers<[1], [0], [0], [1], [0, 0, 1, 1], [], []>} : vector<8x8xbf16>, vector<8x8xbf16>, vector<8x8xf32> -> vector<8x8xf32>
    %105 = tpu.concatenate %56, %72, %88, %104 in 1 : vector<8x8xf32>, vector<8x8xf32>, vector<8x8xf32>, vector<8x8xf32> -> vector<8x32xf32>
    %c0_35 = arith.constant 0 : index
    %c0_36 = arith.constant 0 : index
    %106 = vector.load %arg15[%c0_35, %c0_36] : memref<8x32xf32, #tpu.memory_space<vmem>>, vector<8x32xf32>
    %107 = arith.truncf %105 : vector<8x32xf32> to vector<8x32xbf16>
    %108 = arith.index_cast %c0_i32 : i32 to index
    %c0_37 = arith.constant 0 : index
    %c0_38 = arith.constant 0 : index
    %109 = vector.load %arg6[%108, %c0_37, %c0_38] : memref<1x32x32xbf16, #tpu.memory_space<vmem>>, vector<1x32x32xbf16>
    %110 = vector.shape_cast %109 : vector<1x32x32xbf16> to vector<32x32xbf16>
    %cst_39 = arith.constant dense<0.000000e+00> : vector<8x32xf32>
    %111 = tpu.matmul %107, %110, %cst_39 {dimension_numbers = #tpu.dot_dimension_numbers<[1], [0], [0], [1], [0, 0, 1, 1], [], []>} : vector<8x32xbf16>, vector<32x32xbf16>, vector<8x32xf32> -> vector<8x32xf32>
    %112 = arith.addf %106, %111 : vector<8x32xf32>
    %c0_40 = arith.constant 0 : index
    %c0_41 = arith.constant 0 : index
    %113 = vector.load %arg15[%c0_40, %c0_41] : memref<8x32xf32, #tpu.memory_space<vmem>>, vector<8x32xf32>
    tpu.vector_store %arg15[%c0_40, %c0_41], %112 {strides = array<i32>} : memref<8x32xf32, #tpu.memory_space<vmem>>, vector<8x32xf32>,
    %c1_i32 = arith.constant 1 : i32
    %c0_42 = arith.constant 0 : index
    %c0_43 = arith.constant 0 : index
    %114 = vector.load %arg15[%c0_42, %c0_43] : memref<8x32xf32, #tpu.memory_space<vmem>>, vector<8x32xf32>
    %c0_44 = arith.constant 0 : index
    %c0_45 = arith.constant 0 : index
    %115 = vector.load %arg8[%c0_44, %c0_45] : memref<1x32xf32, #tpu.memory_space<vmem>>, vector<1x32xf32>
    %c0_46 = arith.constant 0 : index
    %c0_47 = arith.constant 0 : index
    %116 = vector.load %arg9[%c0_46, %c0_47] : memref<1x32xf32, #tpu.memory_space<vmem>>, vector<1x32xf32>
    %cst_48 = arith.constant dense<0.000000e+00> : vector<8xf32>
    %117 = vector.multi_reduction <add>, %114, %cst_48 [1] : vector<8x32xf32> to vector<8xf32>
    %118 = vector.shape_cast %117 : vector<8xf32> to vector<8x1xf32>
    %cst_49 = arith.constant 3.200000e+01 : f32
    %119 = vector.broadcast %cst_49 : f32 to vector<8x1xf32>
    %120 = arith.divf %118, %119 : vector<8x1xf32>
    %121 = vector.broadcast %120 : vector<8x1xf32> to vector<8x32xf32>
    %122 = arith.subf %114, %121 : vector<8x32xf32>
    %123 = arith.mulf %122, %122 : vector<8x32xf32>
    %cst_50 = arith.constant dense<0.000000e+00> : vector<8xf32>
    %124 = vector.multi_reduction <add>, %123, %cst_50 [1] : vector<8x32xf32> to vector<8xf32>
    %125 = vector.shape_cast %124 : vector<8xf32> to vector<8x1xf32>
    %cst_51 = arith.constant 3.200000e+01 : f32
    %126 = vector.broadcast %cst_51 : f32 to vector<8x1xf32>
    %127 = arith.divf %125, %126 : vector<8x1xf32>
    %128 = vector.broadcast %120 : vector<8x1xf32> to vector<8x32xf32>
    %129 = arith.subf %114, %128 : vector<8x32xf32>
    %cst_52 = arith.constant 9.99999997E-7 : f32
    %130 = vector.broadcast %cst_52 : f32 to vector<8x1xf32>
    %131 = arith.addf %127, %130 : vector<8x1xf32>
    %132 = math.rsqrt %131 : vector<8x1xf32>
    %133 = vector.broadcast %132 : vector<8x1xf32> to vector<8x32xf32>
    %134 = arith.mulf %129, %133 : vector<8x32xf32>
    %135 = vector.broadcast %115 : vector<1x32xf32> to vector<8x32xf32>
    %136 = arith.mulf %134, %135 : vector<8x32xf32>
    %137 = vector.broadcast %116 : vector<1x32xf32> to vector<8x32xf32>
    %138 = arith.addf %136, %137 : vector<8x32xf32>
    %139 = arith.truncf %138 : vector<8x32xf32> to vector<8x32xbf16>
    %c0_i32_53 = arith.constant 0 : i32
    %140 = arith.index_cast %c0_i32_53 : i32 to index
    %c0_54 = arith.constant 0 : index
    %c0_55 = arith.constant 0 : index
    %141 = vector.load %arg10[%140, %c0_54, %c0_55] : memref<1x32x128xbf16, #tpu.memory_space<vmem>>, vector<1x32x128xbf16>
    %142 = vector.shape_cast %141 : vector<1x32x128xbf16> to vector<32x128xbf16>
    %cst_56 = arith.constant dense<0.000000e+00> : vector<8x128xf32>
    %143 = tpu.matmul %139, %142, %cst_56 {dimension_numbers = #tpu.dot_dimension_numbers<[1], [0], [0], [1], [0, 0, 1, 1], [], []>} : vector<8x32xbf16>, vector<32x128xbf16>, vector<8x128xf32> -> vector<8x128xf32>
    %144 = arith.index_cast %c0_i32_53 : i32 to index
    %c0_57 = arith.constant 0 : index
    %c0_58 = arith.constant 0 : index
    %145 = vector.load %arg11[%144, %c0_57, %c0_58] : memref<1x1x128xf32, #tpu.memory_space<vmem>>, vector<1x1x128xf32>
    %146 = vector.shape_cast %145 : vector<1x1x128xf32> to vector<1x128xf32>
    %147 = vector.broadcast %146 : vector<1x128xf32> to vector<8x128xf32>
    %148 = arith.addf %143, %147 : vector<8x128xf32>
    %cst_59 = arith.constant 5.000000e-01 : f32
    %149 = vector.broadcast %cst_59 : f32 to vector<8x128xf32>
    %150 = arith.mulf %149, %148 : vector<8x128xf32>
    %cst_60 = arith.constant 0.707106769 : f32
    %151 = vector.broadcast %cst_60 : f32 to vector<8x128xf32>
    %152 = arith.mulf %148, %151 : vector<8x128xf32>
    %153 = math.absf %152 : vector<8x128xf32>
    %cst_61 = arith.constant 0.327591091 : f32
    %154 = vector.broadcast %cst_61 : f32 to vector<8x128xf32>
    %155 = arith.mulf %154, %153 : vector<8x128xf32>
    %cst_62 = arith.constant 1.000000e+00 : f32
    %156 = vector.broadcast %cst_62 : f32 to vector<8x128xf32>
    %157 = arith.addf %156, %155 : vector<8x128xf32>
    %cst_63 = arith.constant 1.000000e+00 : f32
    %158 = vector.broadcast %cst_63 : f32 to vector<8x128xf32>
    %159 = arith.divf %158, %157 : vector<8x128xf32>
    %cst_64 = arith.constant 1.06140542 : f32
    %160 = vector.broadcast %cst_64 : f32 to vector<8x128xf32>
    %161 = arith.mulf %160, %159 : vector<8x128xf32>
    %cst_65 = arith.constant 1.45315206 : f32
    %162 = vector.broadcast %cst_65 : f32 to vector<8x128xf32>
    %163 = arith.subf %161, %162 : vector<8x128xf32>
    %164 = arith.mulf %163, %159 : vector<8x128xf32>
    %cst_66 = arith.constant 1.42141378 : f32
    %165 = vector.broadcast %cst_66 : f32 to vector<8x128xf32>
    %166 = arith.addf %164, %165 : vector<8x128xf32>
    %167 = arith.mulf %166, %159 : vector<8x128xf32>
    %cst_67 = arith.constant 0.284496725 : f32
    %168 = vector.broadcast %cst_67 : f32 to vector<8x128xf32>
    %169 = arith.subf %167, %168 : vector<8x128xf32>
    %170 = arith.mulf %169, %159 : vector<8x128xf32>
    %cst_68 = arith.constant 0.254829586 : f32
    %171 = vector.broadcast %cst_68 : f32 to vector<8x128xf32>
    %172 = arith.addf %170, %171 : vector<8x128xf32>
    %173 = arith.mulf %172, %159 : vector<8x128xf32>
    %cst_69 = arith.constant 0.000000e+00 : f32
    %174 = vector.broadcast %cst_69 : f32 to vector<8x128xf32>
    %175 = arith.subf %174, %153 : vector<8x128xf32>
    %176 = arith.mulf %175, %153 : vector<8x128xf32>
    %177 = math.exp %176 : vector<8x128xf32>
    %178 = arith.mulf %173, %177 : vector<8x128xf32>
    %cst_70 = arith.constant 1.000000e+00 : f32
    %179 = vector.broadcast %cst_70 : f32 to vector<8x128xf32>
    %180 = arith.subf %179, %178 : vector<8x128xf32>
    %cst_71 = arith.constant 0.000000e+00 : f32
    %181 = vector.broadcast %cst_71 : f32 to vector<8x128xf32>
    %182 = arith.cmpf oge, %152, %181 : vector<8x128xf32>
    %cst_72 = arith.constant 0.000000e+00 : f32
    %183 = vector.broadcast %cst_72 : f32 to vector<8x128xf32>
    %184 = arith.subf %183, %180 : vector<8x128xf32>
    %185 = arith.select %182, %180, %184 : vector<8x128xi1>, vector<8x128xf32>
    %cst_73 = arith.constant 1.000000e+00 : f32
    %186 = vector.broadcast %cst_73 : f32 to vector<8x128xf32>
    %187 = arith.addf %186, %185 : vector<8x128xf32>
    %188 = arith.mulf %150, %187 : vector<8x128xf32>
    %c0_74 = arith.constant 0 : index
    %c0_75 = arith.constant 0 : index
    %189 = vector.load %arg15[%c0_74, %c0_75] : memref<8x32xf32, #tpu.memory_space<vmem>>, vector<8x32xf32>
    %190 = arith.truncf %188 : vector<8x128xf32> to vector<8x128xbf16>
    %191 = arith.index_cast %c0_i32_53 : i32 to index
    %c0_76 = arith.constant 0 : index
    %c0_77 = arith.constant 0 : index
    %192 = vector.load %arg12[%191, %c0_76, %c0_77] : memref<1x128x32xbf16, #tpu.memory_space<vmem>>, vector<1x128x32xbf16>
    %193 = vector.shape_cast %192 : vector<1x128x32xbf16> to vector<128x32xbf16>
    %cst_78 = arith.constant dense<0.000000e+00> : vector<8x32xf32>
    %194 = tpu.matmul %190, %193, %cst_78 {dimension_numbers = #tpu.dot_dimension_numbers<[1], [0], [0], [1], [0, 0, 1, 1], [], []>} : vector<8x128xbf16>, vector<128x32xbf16>, vector<8x32xf32> -> vector<8x32xf32>
    %195 = arith.addf %189, %194 : vector<8x32xf32>
    %c0_79 = arith.constant 0 : index
    %c0_80 = arith.constant 0 : index
    %196 = vector.load %arg15[%c0_79, %c0_80] : memref<8x32xf32, #tpu.memory_space<vmem>>, vector<8x32xf32>
    tpu.vector_store %arg15[%c0_79, %c0_80], %195 {strides = array<i32>} : memref<8x32xf32, #tpu.memory_space<vmem>>, vector<8x32xf32>,
    %c1_i32_81 = arith.constant 1 : i32
    %c0_82 = arith.constant 0 : index
    %c0_83 = arith.constant 0 : index
    %197 = vector.load %arg15[%c0_82, %c0_83] : memref<8x32xf32, #tpu.memory_space<vmem>>, vector<8x32xf32>
    %c0_84 = arith.constant 0 : index
    %c0_85 = arith.constant 0 : index
    %198 = vector.load %arg13[%c0_84, %c0_85] : memref<1x32xf32, #tpu.memory_space<vmem>>, vector<1x32xf32>
    %199 = vector.broadcast %198 : vector<1x32xf32> to vector<8x32xf32>
    %200 = arith.addf %197, %199 : vector<8x32xf32>
    %c0_86 = arith.constant 0 : index
    %c0_87 = arith.constant 0 : index
    %c0_88 = arith.constant 0 : index
    %201 = vector.load %arg14[%c0_86, %c0_87, %c0_88] : memref<1x8x32xf32, #tpu.memory_space<vmem>>, vector<1x8x32xf32>
    %202 = vector.shape_cast %201 : vector<1x8x32xf32> to vector<8x32xf32>
    %203 = vector.shape_cast %200 : vector<8x32xf32> to vector<1x8x32xf32>
    tpu.vector_store %arg14[%c0_86, %c0_87, %c0_88], %203 {strides = array<i32>} : memref<1x8x32xf32, #tpu.memory_space<vmem>>, vector<1x8x32xf32>,
    return
  }
  func.func @transform_0(%arg0: i32) -> (i32, i32, i32) {
    %c0_i32 = arith.constant 0 : i32
    %c0_i32_0 = arith.constant 0 : i32
    %c0_i32_1 = arith.constant 0 : i32
    return %arg0, %c0_i32, %c0_i32_0 : i32, i32, i32
  }
  func.func @transform_1(%arg0: i32) -> (i32, i32) {
    %c0_i32 = arith.constant 0 : i32
    %c0_i32_0 = arith.constant 0 : i32
    %c0_i32_1 = arith.constant 0 : i32
    return %c0_i32, %c0_i32_0 : i32, i32
  }
  func.func @transform_2(%arg0: i32) -> (i32, i32) {
    %c0_i32 = arith.constant 0 : i32
    %c0_i32_0 = arith.constant 0 : i32
    %c0_i32_1 = arith.constant 0 : i32
    return %c0_i32, %c0_i32_0 : i32, i32
  }
  func.func @transform_3(%arg0: i32) -> (i32, i32, i32) {
    %c0_i32 = arith.constant 0 : i32
    %c0_i32_0 = arith.constant 0 : i32
    %c0_i32_1 = arith.constant 0 : i32
    %c0_i32_2 = arith.constant 0 : i32
    return %c0_i32, %c0_i32_0, %c0_i32_1 : i32, i32, i32
  }
  func.func @transform_4(%arg0: i32) -> (i32, i32, i32) {
    %c0_i32 = arith.constant 0 : i32
    %c0_i32_0 = arith.constant 0 : i32
    %c0_i32_1 = arith.constant 0 : i32
    %c0_i32_2 = arith.constant 0 : i32
    return %c0_i32, %c0_i32_0, %c0_i32_1 : i32, i32, i32
  }
  func.func @transform_5(%arg0: i32) -> (i32, i32, i32) {
    %c0_i32 = arith.constant 0 : i32
    %c0_i32_0 = arith.constant 0 : i32
    %c0_i32_1 = arith.constant 0 : i32
    %c0_i32_2 = arith.constant 0 : i32
    return %c0_i32, %c0_i32_0, %c0_i32_1 : i32, i32, i32
  }
  func.func @transform_6(%arg0: i32) -> (i32, i32) {
    %c0_i32 = arith.constant 0 : i32
    %c0_i32_0 = arith.constant 0 : i32
    %c0_i32_1 = arith.constant 0 : i32
    return %c0_i32, %c0_i32_0 : i32, i32
  }
  func.func @transform_7(%arg0: i32) -> (i32, i32) {
    %c0_i32 = arith.constant 0 : i32
    %c0_i32_0 = arith.constant 0 : i32
    %c0_i32_1 = arith.constant 0 : i32
    return %c0_i32, %c0_i32_0 : i32, i32
  }
  func.func @transform_8(%arg0: i32) -> (i32, i32) {
    %c0_i32 = arith.constant 0 : i32
    %c0_i32_0 = arith.constant 0 : i32
    %c0_i32_1 = arith.constant 0 : i32
    return %c0_i32, %c0_i32_0 : i32, i32
  }
  func.func @transform_9(%arg0: i32) -> (i32, i32, i32) {
    %c0_i32 = arith.constant 0 : i32
    %c0_i32_0 = arith.constant 0 : i32
    %c0_i32_1 = arith.constant 0 : i32
    %c0_i32_2 = arith.constant 0 : i32
    return %c0_i32, %c0_i32_0, %c0_i32_1 : i32, i32, i32
  }
  func.func @transform_10(%arg0: i32) -> (i32, i32, i32) {
    %c0_i32 = arith.constant 0 : i32
    %c0_i32_0 = arith.constant 0 : i32
    %c0_i32_1 = arith.constant 0 : i32
    %c0_i32_2 = arith.constant 0 : i32
    return %c0_i32, %c0_i32_0, %c0_i32_1 : i32, i32, i32
  }
  func.func @transform_11(%arg0: i32) -> (i32, i32, i32) {
    %c0_i32 = arith.constant 0 : i32
    %c0_i32_0 = arith.constant 0 : i32
    %c0_i32_1 = arith.constant 0 : i32
    %c0_i32_2 = arith.constant 0 : i32
    return %c0_i32, %c0_i32_0, %c0_i32_1 : i32, i32, i32
  }
  func.func @transform_12(%arg0: i32) -> (i32, i32) {
    %c0_i32 = arith.constant 0 : i32
    %c0_i32_0 = arith.constant 0 : i32
    %c0_i32_1 = arith.constant 0 : i32
    return %c0_i32, %c0_i32_0 : i32, i32
  }
  func.func @transform_13(%arg0: i32) -> (i32, i32, i32) {
    %c0_i32 = arith.constant 0 : i32
    %c0_i32_0 = arith.constant 0 : i32
    %c0_i32_1 = arith.constant 0 : i32
    return %arg0, %c0_i32, %c0_i32_0 : i32, i32, i32
  }
}

</mosaic_0001>

<llo_original>
// kernel: tpu_custom_call.1
$region0: #{tpu_custom_call.1}
  #allocation0 [shape = 'u32[]', space=smem, size = 0x4, offset = 0x4, fixed_abs, tag = 'smem constant byte address 0x4 - core index']
  #allocation1 [shape = 'u32[72,128]{1,0:T(1,128)}', space=vmem, size = 0x9000, scoped, tag = 'internal scratch']
  #allocation2 [shape = 'f32[8,32]{1,0:T(8,128)}', space=vmem, size = 0x1000, scoped, tag = 'scratch operand']
  %s0 = inlined_call_operand.vmem [shape: f32[2,8,32], index: 0, kind: input, shape index: {}]
  %s1 = inlined_call_operand.vmem [shape: f32[1,32], index: 1, kind: input, shape index: {}]
  %s2 = inlined_call_operand.vmem [shape: f32[1,32], index: 2, kind: input, shape index: {}]
  %s3 = inlined_call_operand.vmem [shape: bf16[1,32,96], index: 3, kind: input, shape index: {}]
  %s4 = inlined_call_operand.vmem [shape: f32[1,1,96], index: 4, kind: input, shape index: {}]
  %s5 = inlined_call_operand.vmem [shape: bf16[1,32,32], index: 5, kind: input, shape index: {}]
  %s6 = inlined_call_operand.vmem [shape: f32[1,32], index: 6, kind: input, shape index: {}]
  %s7 = inlined_call_operand.vmem [shape: f32[1,32], index: 7, kind: input, shape index: {}]
  %s8 = inlined_call_operand.vmem [shape: f32[1,32], index: 8, kind: input, shape index: {}]
  %s9 = inlined_call_operand.vmem [shape: bf16[1,32,128], index: 9, kind: input, shape index: {}]
  %s10 = inlined_call_operand.vmem [shape: f32[1,1,128], index: 10, kind: input, shape index: {}]
  %s11 = inlined_call_operand.vmem [shape: bf16[1,128,32], index: 11, kind: input, shape index: {}]
  %s12 = inlined_call_operand.vmem [shape: f32[1,32], index: 12, kind: input, shape index: {}]
  %s13 = inlined_call_operand.hbm [shape: f32[2,8,32], index: 13, kind: output, shape index: {}]
  %s14 = sld [smem:[#allocation0]]
  $region85: #{tpu_custom_call.1} parent=0
    _
  %s16 = ssub.s32 1, %s14
  %s17 = scalar_select 0, %s16, %s14
  $region1: #{tpu_custom_call.1} parent=0
    #allocation3 [shape = 'u8[8192]{0}', space=vmem, size = 0x2000, scoped, tag = 'output window, operand 0']
    #allocation4 [shape = 's32[2]{0}', space=sflag, size = 0x8, scoped, tag = 'scoped memory for tpu_custom_call.1']
    %18 = vsyncpa [#allocation4], 0
    %s19 = scalar_lea.sflag [#allocation4], 1
    %20 = vsyncpa %s19, 0
    loop: start=0, step=1, limit=4
    $region2: #{tpu_custom_call.1} parent=1 // loop_pre_header
      _
    $region3: #{tpu_custom_call.1} parent=1 // loop_header
      %s22 = sphi 0, %s26
      %p23 = scmp.ge.s32.totalorder %s22, 4
      %s32 = sphi 0, %s34
      %s35 = sphi 0, %s32
      %s36 = sphi 0, %s35
      %s52 = sphi 0, %s36
      %s56 = sphi 0, %s56
      %s58 = sphi 0, %s56
      %s59 = sphi 0, %s58
      %s73 = sphi 0, %s59
      %s77 = sphi 0, %s77
      %s79 = sphi 0, %s77
      %s80 = sphi 0, %s79
      %s94 = sphi 0, %s80
      %s98 = sphi 0, %s98
      %s100 = sphi 0, %s98
      %s101 = sphi 0, %s100
      %s115 = sphi 0, %s101
      %s119 = sphi 0, %s119
      %s121 = sphi 0, %s119
      %s122 = sphi 0, %s121
      %s136 = sphi 0, %s122
      %s140 = sphi 0, %s140
      %s142 = sphi 0, %s140
      %s143 = sphi 0, %s142
      %s157 = sphi 0, %s143
      %s161 = sphi 0, %s161
      %s163 = sphi 0, %s161
      %s164 = sphi 0, %s163
      %s178 = sphi 0, %s164
      %s182 = sphi 0, %s182
      %s184 = sphi 0, %s182
      %s185 = sphi 0, %s184
      %s199 = sphi 0, %s185
      %s203 = sphi 0, %s203
      %s205 = sphi 0, %s203
      %s206 = sphi 0, %s205
      %s220 = sphi 0, %s206
      %s224 = sphi 0, %s224
      %s226 = sphi 0, %s224
      %s227 = sphi 0, %s226
      %s241 = sphi 0, %s227
      %s245 = sphi 0, %s245
      %s247 = sphi 0, %s245
      %s248 = sphi 0, %s247
      %s262 = sphi 0, %s248
      %s266 = sphi 0, %s266
      %s268 = sphi 0, %s266
      %s269 = sphi 0, %s268
      %s283 = sphi 0, %s269
      %s287 = sphi 0, %s287
      %s289 = sphi 0, %s287
      %s290 = sphi 0, %s289
      %s304 = sphi 0, %s290
      %s310 = sphi 0, %s312
      %s313 = sphi 0, %s310
      %s314 = sphi 0, %s313
      %s330 = sphi 0, %s314
    $region4: #{tpu_custom_call.1} parent=1 // loop_header_branch
      %25 = sbr.rel (%p23) target = $region8
    $region5: #{tpu_custom_call.1} parent=1 // loop_body
      %s27 = ssub.s32 %s22, 1
      %s28 = ssub.s32 %s22, 2
      %s29 = sadd.s32 %s22, 1
      %s30 = ssub.s32 %s22, %s29
      %p31 = scmp.eq.s32.totalorder %s30, 0
      %s33 = sadd.s32 %s32, 1
      %s34 = scalar_select %p31, %s32, %s33
      %p37 = pneg %p31
      %p38 = scmp.eq.s32.totalorder %s22, 1
      %p39 = por %p37, %p38
      %p40 = scmp.ne.s32.totalorder %s32, %s35
      %p41 = scmp.eq.s32.totalorder %s22, 0
      %p42 = por %p40, %p41
      %p43 = scmp.ne.s32.totalorder %s32, %s35
      %p44 = scmp.eq.s32.totalorder %s27, 1
      %p45 = por %p43, %p44
      %p46 = scmp.ne.s32.totalorder %s35, %s36
      %p47 = scmp.eq.s32.totalorder %s27, 0
      %p48 = por %p46, %p47
      %p49 = scmp.ne.s32.totalorder %s35, %s36
      %p50 = scmp.eq.s32.totalorder %s28, 1
      %p51 = por %p49, %p50
      %p53 = scmp.ne.s32.totalorder %s36, %s52
      %p54 = scmp.eq.s32.totalorder %s28, 0
      %p55 = por %p53, %p54
      %s57 = sadd.s32 %s56, 1
      %p60 = scmp.eq.s32.totalorder %s22, 1
      %p61 = scmp.ne.s32.totalorder %s56, %s58
      %p62 = scmp.eq.s32.totalorder %s22, 0
      %p63 = por %p61, %p62
      %p64 = scmp.ne.s32.totalorder %s56, %s58
      %p65 = scmp.eq.s32.totalorder %s27, 1
      %p66 = por %p64, %p65
      %p67 = scmp.ne.s32.totalorder %s58, %s59
      %p68 = scmp.eq.s32.totalorder %s27, 0
      %p69 = por %p67, %p68
      %p70 = scmp.ne.s32.totalorder %s58, %s59
      %p71 = scmp.eq.s32.totalorder %s28, 1
      %p72 = por %p70, %p71
      %p74 = scmp.ne.s32.totalorder %s59, %s73
      %p75 = scmp.eq.s32.totalorder %s28, 0
      %p76 = por %p74, %p75
      %s78 = sadd.s32 %s77, 1
      %p81 = scmp.eq.s32.totalorder %s22, 1
      %p82 = scmp.ne.s32.totalorder %s77, %s79
      %p83 = scmp.eq.s32.totalorder %s22, 0
      %p84 = por %p82, %p83
      %p85 = scmp.ne.s32.totalorder %s77, %s79
      %p86 = scmp.eq.s32.totalorder %s27, 1
      %p87 = por %p85, %p86
      %p88 = scmp.ne.s32.totalorder %s79, %s80
      %p89 = scmp.eq.s32.totalorder %s27, 0
      %p90 = por %p88, %p89
      %p91 = scmp.ne.s32.totalorder %s79, %s80
      %p92 = scmp.eq.s32.totalorder %s28, 1
      %p93 = por %p91, %p92
      %p95 = scmp.ne.s32.totalorder %s80, %s94
      %p96 = scmp.eq.s32.totalorder %s28, 0
      %p97 = por %p95, %p96
      %s99 = sadd.s32 %s98, 1
      %p102 = scmp.eq.s32.totalorder %s22, 1
      %p103 = scmp.ne.s32.totalorder %s98, %s100
      %p104 = scmp.eq.s32.totalorder %s22, 0
      %p105 = por %p103, %p104
      %p106 = scmp.ne.s32.totalorder %s98, %s100
      %p107 = scmp.eq.s32.totalorder %s27, 1
      %p108 = por %p106, %p107
      %p109 = scmp.ne.s32.totalorder %s100, %s101
      %p110 = scmp.eq.s32.totalorder %s27, 0
      %p111 = por %p109, %p110
      %p112 = scmp.ne.s32.totalorder %s100, %s101
      %p113 = scmp.eq.s32.totalorder %s28, 1
      %p114 = por %p112, %p113
      %p116 = scmp.ne.s32.totalorder %s101, %s115
      %p117 = scmp.eq.s32.totalorder %s28, 0
      %p118 = por %p116, %p117
      %s120 = sadd.s32 %s119, 1
      %p123 = scmp.eq.s32.totalorder %s22, 1
      %p124 = scmp.ne.s32.totalorder %s119, %s121
      %p125 = scmp.eq.s32.totalorder %s22, 0
      %p126 = por %p124, %p125
      %p127 = scmp.ne.s32.totalorder %s119, %s121
      %p128 = scmp.eq.s32.totalorder %s27, 1
      %p129 = por %p127, %p128
      %p130 = scmp.ne.s32.totalorder %s121, %s122
      %p131 = scmp.eq.s32.totalorder %s27, 0
      %p132 = por %p130, %p131
      %p133 = scmp.ne.s32.totalorder %s121, %s122
      %p134 = scmp.eq.s32.totalorder %s28, 1
      %p135 = por %p133, %p134
      %p137 = scmp.ne.s32.totalorder %s122, %s136
      %p138 = scmp.eq.s32.totalorder %s28, 0
      %p139 = por %p137, %p138
      %s141 = sadd.s32 %s140, 1
      %p144 = scmp.eq.s32.totalorder %s22, 1
      %p145 = scmp.ne.s32.totalorder %s140, %s142
      %p146 = scmp.eq.s32.totalorder %s22, 0
      %p147 = por %p145, %p146
      %p148 = scmp.ne.s32.totalorder %s140, %s142
      %p149 = scmp.eq.s32.totalorder %s27, 1
      %p150 = por %p148, %p149
      %p151 = scmp.ne.s32.totalorder %s142, %s143
      %p152 = scmp.eq.s32.totalorder %s27, 0
      %p153 = por %p151, %p152
      %p154 = scmp.ne.s32.totalorder %s142, %s143
      %p155 = scmp.eq.s32.totalorder %s28, 1
      %p156 = por %p154, %p155
      %p158 = scmp.ne.s32.totalorder %s143, %s157
      %p159 = scmp.eq.s32.totalorder %s28, 0
      %p160 = por %p158, %p159
      %s162 = sadd.s32 %s161, 1
      %p165 = scmp.eq.s32.totalorder %s22, 1
      %p166 = scmp.ne.s32.totalorder %s161, %s163
      %p167 = scmp.eq.s32.totalorder %s22, 0
      %p168 = por %p166, %p167
      %p169 = scmp.ne.s32.totalorder %s161, %s163
      %p170 = scmp.eq.s32.totalorder %s27, 1
      %p171 = por %p169, %p170
      %p172 = scmp.ne.s32.totalorder %s163, %s164
      %p173 = scmp.eq.s32.totalorder %s27, 0
      %p174 = por %p172, %p173
      %p175 = scmp.ne.s32.totalorder %s163, %s164
      %p176 = scmp.eq.s32.totalorder %s28, 1
      %p177 = por %p175, %p176
      %p179 = scmp.ne.s32.totalorder %s164, %s178
      %p180 = scmp.eq.s32.totalorder %s28, 0
      %p181 = por %p179, %p180
      %s183 = sadd.s32 %s182, 1
      %p186 = scmp.eq.s32.totalorder %s22, 1
      %p187 = scmp.ne.s32.totalorder %s182, %s184
      %p188 = scmp.eq.s32.totalorder %s22, 0
      %p189 = por %p187, %p188
      %p190 = scmp.ne.s32.totalorder %s182, %s184
      %p191 = scmp.eq.s32.totalorder %s27, 1
      %p192 = por %p190, %p191
      %p193 = scmp.ne.s32.totalorder %s184, %s185
      %p194 = scmp.eq.s32.totalorder %s27, 0
      %p195 = por %p193, %p194
      %p196 = scmp.ne.s32.totalorder %s184, %s185
      %p197 = scmp.eq.s32.totalorder %s28, 1
      %p198 = por %p196, %p197
      %p200 = scmp.ne.s32.totalorder %s185, %s199
      %p201 = scmp.eq.s32.totalorder %s28, 0
      %p202 = por %p200, %p201
      %s204 = sadd.s32 %s203, 1
      %p207 = scmp.eq.s32.totalorder %s22, 1
      %p208 = scmp.ne.s32.totalorder %s203, %s205
      %p209 = scmp.eq.s32.totalorder %s22, 0
      %p210 = por %p208, %p209
      %p211 = scmp.ne.s32.totalorder %s203, %s205
      %p212 = scmp.eq.s32.totalorder %s27, 1
      %p213 = por %p211, %p212
      %p214 = scmp.ne.s32.totalorder %s205, %s206
      %p215 = scmp.eq.s32.totalorder %s27, 0
      %p216 = por %p214, %p215
      %p217 = scmp.ne.s32.totalorder %s205, %s206
      %p218 = scmp.eq.s32.totalorder %s28, 1
      %p219 = por %p217, %p218
      %p221 = scmp.ne.s32.totalorder %s206, %s220
      %p222 = scmp.eq.s32.totalorder %s28, 0
      %p223 = por %p221, %p222
      %s225 = sadd.s32 %s224, 1
      %p228 = scmp.eq.s32.totalorder %s22, 1
      %p229 = scmp.ne.s32.totalorder %s224, %s226
      %p230 = scmp.eq.s32.totalorder %s22, 0
      %p231 = por %p229, %p230
      %p232 = scmp.ne.s32.totalorder %s224, %s226
      %p233 = scmp.eq.s32.totalorder %s27, 1
      %p234 = por %p232, %p233
      %p235 = scmp.ne.s32.totalorder %s226, %s227
      %p236 = scmp.eq.s32.totalorder %s27, 0
      %p237 = por %p235, %p236
      %p238 = scmp.ne.s32.totalorder %s226, %s227
      %p239 = scmp.eq.s32.totalorder %s28, 1
      %p240 = por %p238, %p239
      %p242 = scmp.ne.s32.totalorder %s227, %s241
      %p243 = scmp.eq.s32.totalorder %s28, 0
      %p244 = por %p242, %p243
      %s246 = sadd.s32 %s245, 1
      %p249 = scmp.eq.s32.totalorder %s22, 1
      %p250 = scmp.ne.s32.totalorder %s245, %s247
      %p251 = scmp.eq.s32.totalorder %s22, 0
      %p252 = por %p250, %p251
      %p253 = scmp.ne.s32.totalorder %s245, %s247
      %p254 = scmp.eq.s32.totalorder %s27, 1
      %p255 = por %p253, %p254
      %p256 = scmp.ne.s32.totalorder %s247, %s248
      %p257 = scmp.eq.s32.totalorder %s27, 0
      %p258 = por %p256, %p257
      %p259 = scmp.ne.s32.totalorder %s247, %s248
      %p260 = scmp.eq.s32.totalorder %s28, 1
      %p261 = por %p259, %p260
      %p263 = scmp.ne.s32.totalorder %s248, %s262
      %p264 = scmp.eq.s32.totalorder %s28, 0
      %p265 = por %p263, %p264
      %s267 = sadd.s32 %s266, 1
      %p270 = scmp.eq.s32.totalorder %s22, 1
      %p271 = scmp.ne.s32.totalorder %s266, %s268
      %p272 = scmp.eq.s32.totalorder %s22, 0
      %p273 = por %p271, %p272
      %p274 = scmp.ne.s32.totalorder %s266, %s268
      %p275 = scmp.eq.s32.totalorder %s27, 1
      %p276 = por %p274, %p275
      %p277 = scmp.ne.s32.totalorder %s268, %s269
      %p278 = scmp.eq.s32.totalorder %s27, 0
      %p279 = por %p277, %p278
      %p280 = scmp.ne.s32.totalorder %s268, %s269
      %p281 = scmp.eq.s32.totalorder %s28, 1
      %p282 = por %p280, %p281
      %p284 = scmp.ne.s32.totalorder %s269, %s283
      %p285 = scmp.eq.s32.totalorder %s28, 0
      %p286 = por %p284, %p285
      %s288 = sadd.s32 %s287, 1
      %p291 = scmp.eq.s32.totalorder %s22, 1
      %p292 = scmp.ne.s32.totalorder %s287, %s289
      %p293 = scmp.eq.s32.totalorder %s22, 0
      %p294 = por %p292, %p293
      %p295 = scmp.ne.s32.totalorder %s287, %s289
      %p296 = scmp.eq.s32.totalorder %s27, 1
      %p297 = por %p295, %p296
      %p298 = scmp.ne.s32.totalorder %s289, %s290
      %p299 = scmp.eq.s32.totalorder %s27, 0
      %p300 = por %p298, %p299
      %p301 = scmp.ne.s32.totalorder %s289, %s290
      %p302 = scmp.eq.s32.totalorder %s28, 1
      %p303 = por %p301, %p302
      %p305 = scmp.ne.s32.totalorder %s290, %s304
      %p306 = scmp.eq.s32.totalorder %s28, 0
      %p307 = por %p305, %p306
      %s308 = ssub.s32 %s22, %s29
      %p309 = scmp.eq.s32.totalorder %s308, 0
      %s311 = sadd.s32 %s310, 1
      %s312 = scalar_select %p309, %s310, %s311
      %p315 = pneg %p309
      %p316 = scmp.eq.s32.totalorder %s22, 1
      %p317 = por %p315, %p316
      %p318 = scmp.ne.s32.totalorder %s310, %s313
      %p319 = scmp.eq.s32.totalorder %s22, 0
      %p320 = por %p318, %p319
      %p321 = scmp.ne.s32.totalorder %s310, %s313
      %p322 = scmp.eq.s32.totalorder %s27, 1
      %p323 = por %p321, %p322
      %p324 = scmp.ne.s32.totalorder %s313, %s314
      %p325 = scmp.eq.s32.totalorder %s27, 0
      %p326 = por %p324, %p325
      %p327 = scmp.ne.s32.totalorder %s313, %s314
      %p328 = scmp.eq.s32.totalorder %s28, 1
      %p329 = por %p327, %p328
      %p331 = scmp.ne.s32.totalorder %s314, %s330
      %p332 = scmp.eq.s32.totalorder %s28, 0
      %p333 = por %p331, %p332
      %p334 = scmp.le.s32.totalorder 1, %s22
      %p335 = scmp.lt.s32.totalorder %s22, 3
      %p336 = pnand %p334, %p335
      %p337 = pneg %p336
      // Predicated region
      $region9: #{tpu_custom_call.1} parent=5 // pred_check
        _
      $region10: #{tpu_custom_call.1} parent=5 // pred_check_branch
        %339 = sbr.rel (%p336) target = $region12
      $region11: #{tpu_custom_call.1} parent=5 // pred_region
        %s340 = ssub.s32 %s22, 1
        // Predicated region
        $region13: #{tpu_custom_call.1} parent=11 // pred_check
          %p341 = pneg %p69
        $region14: #{tpu_custom_call.1} parent=11 // pred_check_branch
          %343 = sbr.rel (%p341) target = $region16
        $region15: #{tpu_custom_call.1} parent=11 // pred_region
          _
        $region16: #{tpu_custom_call.1} parent=11 // pred_fallthru
          _
        // Predicated region
        $region17: #{tpu_custom_call.1} parent=11 // pred_check
          %p344 = pneg %p90
        $region18: #{tpu_custom_call.1} parent=11 // pred_check_branch
          %346 = sbr.rel (%p344) target = $region20
        $region19: #{tpu_custom_call.1} parent=11 // pred_region
          _
        $region20: #{tpu_custom_call.1} parent=11 // pred_fallthru
          _
        // Predicated region
        $region21: #{tpu_custom_call.1} parent=11 // pred_check
          %p347 = pneg %p111
        $region22: #{tpu_custom_call.1} parent=11 // pred_check_branch
          %349 = sbr.rel (%p347) target = $region24
        $region23: #{tpu_custom_call.1} parent=11 // pred_region
          _
        $region24: #{tpu_custom_call.1} parent=11 // pred_fallthru
          _
        // Predicated region
        $region25: #{tpu_custom_call.1} parent=11 // pred_check
          %p350 = pneg %p132
        $region26: #{tpu_custom_call.1} parent=11 // pred_check_branch
          %352 = sbr.rel (%p350) target = $region28
        $region27: #{tpu_custom_call.1} parent=11 // pred_region
          _
        $region28: #{tpu_custom_call.1} parent=11 // pred_fallthru
          _
        // Predicated region
        $region29: #{tpu_custom_call.1} parent=11 // pred_check
          %p353 = pneg %p153
        $region30: #{tpu_custom_call.1} parent=11 // pred_check_branch
          %355 = sbr.rel (%p353) target = $region32
        $region31: #{tpu_custom_call.1} parent=11 // pred_region
          _
        $region32: #{tpu_custom_call.1} parent=11 // pred_fallthru
          _
        // Predicated region
        $region33: #{tpu_custom_call.1} parent=11 // pred_check
          %p356 = pneg %p174
        $region34: #{tpu_custom_call.1} parent=11 // pred_check_branch
          %358 = sbr.rel (%p356) target = $region36
        $region35: #{tpu_custom_call.1} parent=11 // pred_region
          _
        $region36: #{tpu_custom_call.1} parent=11 // pred_fallthru
          _
        // Predicated region
        $region37: #{tpu_custom_call.1} parent=11 // pred_check
          %p359 = pneg %p195
        $region38: #{tpu_custom_call.1} parent=11 // pred_check_branch
          %361 = sbr.rel (%p359) target = $region40
        $region39: #{tpu_custom_call.1} parent=11 // pred_region
          _
        $region40: #{tpu_custom_call.1} parent=11 // pred_fallthru
          _
        // Predicated region
        $region41: #{tpu_custom_call.1} parent=11 // pred_check
          %p362 = pneg %p216
        $region42: #{tpu_custom_call.1} parent=11 // pred_check_branch
          %364 = sbr.rel (%p362) target = $region44
        $region43: #{tpu_custom_call.1} parent=11 // pred_region
          _
        $region44: #{tpu_custom_call.1} parent=11 // pred_fallthru
          _
        // Predicated region
        $region45: #{tpu_custom_call.1} parent=11 // pred_check
          %p365 = pneg %p237
        $region46: #{tpu_custom_call.1} parent=11 // pred_check_branch
          %367 = sbr.rel (%p365) target = $region48
        $region47: #{tpu_custom_call.1} parent=11 // pred_region
          _
        $region48: #{tpu_custom_call.1} parent=11 // pred_fallthru
          _
        // Predicated region
        $region49: #{tpu_custom_call.1} parent=11 // pred_check
          %p368 = pneg %p258
        $region50: #{tpu_custom_call.1} parent=11 // pred_check_branch
          %370 = sbr.rel (%p368) target = $region52
        $region51: #{tpu_custom_call.1} parent=11 // pred_region
          _
        $region52: #{tpu_custom_call.1} parent=11 // pred_fallthru
          _
        // Predicated region
        $region53: #{tpu_custom_call.1} parent=11 // pred_check
          %p371 = pneg %p279
        $region54: #{tpu_custom_call.1} parent=11 // pred_check_branch
          %373 = sbr.rel (%p371) target = $region56
        $region55: #{tpu_custom_call.1} parent=11 // pred_region
          _
        $region56: #{tpu_custom_call.1} parent=11 // pred_fallthru
          _
        // Predicated region
        $region57: #{tpu_custom_call.1} parent=11 // pred_check
          %p374 = pneg %p300
        $region58: #{tpu_custom_call.1} parent=11 // pred_check_branch
          %376 = sbr.rel (%p374) target = $region60
        $region59: #{tpu_custom_call.1} parent=11 // pred_region
          _
        $region60: #{tpu_custom_call.1} parent=11 // pred_fallthru
          _
      $region12: #{tpu_custom_call.1} parent=5 // pred_fallthru
        _
      %p377 = scmp.lt.s32.totalorder %s22, 2
      // Predicated region
      $region61: #{tpu_custom_call.1} parent=5 // pred_check
        %p378 = pneg %p377
      $region62: #{tpu_custom_call.1} parent=5 // pred_check_branch
        %380 = sbr.rel (%p378) target = $region64
      $region63: #{tpu_custom_call.1} parent=5 // pred_region
        // Predicated region
        $region65: #{tpu_custom_call.1} parent=63 // pred_check
          %p381 = pneg %p42
        $region66: #{tpu_custom_call.1} parent=63 // pred_check_branch
          %383 = sbr.rel (%p381) target = $region68
        $region67: #{tpu_custom_call.1} parent=63 // pred_region
          %p384 = scmp.lt.s32.totalorder %s22, 1
          %s385 = scalar_select %p384, %s22, 1
          %s386 = smul.addr %s385, 8
          %s387 = scalar_lea.vmem %s0, %s386
        $region68: #{tpu_custom_call.1} parent=63 // pred_fallthru
          _
      $region64: #{tpu_custom_call.1} parent=5 // pred_fallthru
        _
      %p388 = scmp.le.s32.totalorder 1, %s22
      %p389 = scmp.lt.s32.totalorder %s22, 3
      %p390 = pnand %p388, %p389
      %p391 = pneg %p390
      // Predicated region
      $region69: #{tpu_custom_call.1} parent=5 // pred_check
        _
      $region70: #{tpu_custom_call.1} parent=5 // pred_check_branch
        %393 = sbr.rel (%p390) target = $region72
      $region71: #{tpu_custom_call.1} parent=5 // pred_region
        %s394 = ssub.s32 %s22, 1
        %p395 = scmp.lt.s32.totalorder %s27, 1
        %s396 = scalar_select %p395, %s27, 1
        %s397 = smul.addr %s396, 8
        %s398 = scalar_lea.vmem %s0, %s397
        %p399 = pneg %p48
        %p400 = pneg %p45
        %p401 = pneg %p69
        %p402 = pneg %p66
        %p403 = pneg %p90
        %p404 = pneg %p87
        %p405 = pneg %p111
        %p406 = pneg %p108
        %p407 = pneg %p132
        %p408 = pneg %p129
        %p409 = pneg %p153
        %p410 = pneg %p150
        %p411 = pneg %p174
        %p412 = pneg %p171
        %p413 = pneg %p195
        %p414 = pneg %p192
        %p415 = pneg %p216
        %p416 = pneg %p213
        %p417 = pneg %p237
        %p418 = pneg %p234
        %p419 = pneg %p258
        %p420 = pneg %p255
        %p421 = pneg %p279
        %p422 = pneg %p276
        %p423 = pneg %p300
        %p424 = pneg %p297
        %p425 = pneg %p326
        %p426 = pneg %p323
        %s427 = sand.u32 %s313, 1
        %s428 = scalar_lea.sflag [#allocation4], %s427
        %s429 = sand.u32 %s313, 1
        %s430 = smul.addr %s429, 8
        %s431 = scalar_lea.vmem [#allocation3], %s430
        %p432 = scmp.lt.s32.totalorder %s27, 1
        %s433 = scalar_select %p432, %s27, 1
        %s434 = smul.addr %s433, 8
        %s435 = scalar_lea.vmem %s0, %s434
        %v437 = vld [vmem:[%s435] sm:$0xff]
        %v438 = vld [vmem:[%s1] sm:$0x1]
        %v439 = vld [vmem:[%s2] sm:$0x1]
        %vm440 = vcmask 261120
        %v441 = vsel %vm440, %v437, 0.0
        %442 = vadd.xlane.f32.xlu0 %v441
        %v443 = vpop.xlane.xlu0 %442
        %v444 = vrcp.pop 32.0
        %v445 = vmul.f32 32.0, %v444
        %v446 = vsub.f32 1.0, %v445
        %v447 = vmul.f32 %v444, %v446
        %v448 = vadd.f32 %v444, %v447
        %vm449 = vweird.f32 %v444
        %v450 = vsel %vm449, %v444, %v448
        %v451 = vmul.f32 %v443, %v450
        %v452 = vsub.f32 %v437, %v451
        %v453 = vmul.f32 %v452, %v452
        %v454 = vsel %vm440, %v453, 0.0
        %455 = vadd.xlane.f32.xlu0 %v454
        %v456 = vpop.xlane.xlu0 %455
        %v457 = vmul.f32 %v456, %v450
        %v458 = vadd.f32 %v457, 1e-06
        %v459 = vrsqrt.pop %v458
        %v460 = vmul.f32 %v459, %v458
        %v461 = vmul.f32 %v460, %v459
        %v462 = vmul.f32 0.5, %v461
        %v463 = vsub.f32 1.5, %v462
        %v464 = vmul.f32 %v459, %v463
        %vm465 = vweird.f32 %v458
        %vm466 = vweird.f32 %v459
        %vm467 = vmor %vm465, %vm466
        %v468 = vsel %vm467, %v459, %v464
        %v469 = vmul.f32 %v452, %v468
        %v471 = vperm.slane %v438, 0
        %v473 = vmul.f32 %v469, %v471
        %v475 = vperm.slane %v439, 0
        %v477 = vadd.f32 %v473, %v475
        %v478 = vpack.c.bf16 %v477, %v477
        %v479 = vld [vmem:[%s6] sm:$0x1]
        %v481 = vperm.slane %v479, 0
        %v483 = vadd.f32 %v437, %v481
        %484 = vst.msk [vmem:[#allocation2] sm:$0xff] %vm440, %v483
        %v485 = vld [vmem:[%s3] sm:$0xf]
        %v486 = vld [vmem:[%s3 + $0x4] sm:$0xf]
        %v487 = vld [vmem:[%s3 + $0x8] sm:$0xf]
        %v488 = vld [vmem:[%s3 + $0xc] sm:$0xf]
        %v489 = vld [vmem:[%s4] sm:$0x1]
        %v491 = vperm.slane %v489, 0
        %v497 = vunpack.c.l.b16 %v485
        %v498 = vunpack.c.l.b16 %v486
        %v499 = vunpack.c.l.b16 %v487
        %v500 = vunpack.c.l.b16 %v488
        %v501 = vpack.c.b16 %v498, %v497
        %v502 = vpack.c.b16 %v500, %v499
        %v506 = vsel %vm440, %v478, 0
        %508 = vmatpush.bf16.msra.mxu0 0
        %509 = vmatpush.bf16.msra.mxu0 0
        %510 = vmatpush.bf16.msra.mxu0 0
        %511 = vmatpush.bf16.msra.mxu0 0
        %512 = vmatpush.bf16.msra.mxu0 0
        %513 = vmatpush.bf16.msra.mxu0 0
        %514 = vmatpush.bf16.msra.mxu0 %v502
        %515 = vmatpush.bf16.msra.mxu0 %v501
        %516 = vmatmul.bf16.gmra.mxu0 %v506
        %v517 = vpop.f32.mrf.mxu0
        %v518 = vadd.f32 %v491, %v517
        %v519 = vpop.f32.mrf.mxu0
        %520 = vdwg.mxu0
        %v521 = vpack.c.bf16 %v518, %v518
        %v523 = vunpack.c.l.b16 %v521
        %v524 = vpack.c.b16 %v523, %v523
        %525 = vrot.lane.b32.xlu0 %v524, 96
        %v526 = vpop.permute.xlu0 %525
        %vm527 = vcmask 64512
        %v529 = vsel %vm527, %v521, 0
        %v532 = vsel %vm527, %v526, 0
        %534 = vmatpush.bf16.xpose.msra.mxu0 0
        %535 = vmatpush.bf16.xpose.msra.mxu0 0
        %536 = vmatpush.bf16.xpose.msra.mxu0 0
        %537 = vmatpush.bf16.xpose.msra.mxu0 0
        %538 = vmatpush.bf16.xpose.msra.mxu0 0
        %539 = vmatpush.bf16.xpose.msra.mxu0 0
        %540 = vmatpush.bf16.xpose.msra.mxu0 0
        %541 = vmatpush.bf16.xpose.msra.mxu0 %v532
        %542 = vmatmul.bf16.gmra.mxu0 %v529
        %v543 = vpop.f32.mrf.mxu0
        %v544 = vadd.f32 0.0, %v543
        %v545 = vpop.f32.mrf.mxu0
        %546 = vdwg.mxu0
        %v547 = vsel %vm527, %v544, -inf
        %548 = vmax.xlane.f32.xlu0 %v547
        %v549 = vpop.xlane.xlu0 %548
        %v550 = vsub.f32 %v544, %v549
        %v551 = vmul.f32 %v550, 1.442695
        %v552 = vpow.pop %v551
        %v553 = vsel %vm527, %v552, 0.0
        %554 = vadd.xlane.f32.xlu0 %v553
        %v555 = vpop.xlane.xlu0 %554
        %v556 = vrcp.pop %v555
        %v557 = vmul.f32 %v552, %v556
        %v558 = vpack.c.bf16 %v557, %v557
        %559 = vrot.lane.b32.xlu0 %v524, 64
        %v560 = vpop.permute.xlu0 %559
        %v562 = vsel %vm527, %v558, 0
        %vm564 = vcmask 1043456
        %v566 = vsel %vm564, %v560, 0
        %568 = vmatpush.bf16.msra.mxu0 0
        %569 = vmatpush.bf16.msra.mxu0 0
        %570 = vmatpush.bf16.msra.mxu0 0
        %571 = vmatpush.bf16.msra.mxu0 0
        %572 = vmatpush.bf16.msra.mxu0 0
        %573 = vmatpush.bf16.msra.mxu0 0
        %574 = vmatpush.bf16.msra.mxu0 0
        %575 = vmatpush.bf16.msra.mxu0 %v566
        %576 = vmatmul.bf16.gmra.mxu0 %v562
        %v577 = vpop.f32.mrf.mxu0
        %v578 = vadd.f32 0.0, %v577
        %v579 = vpop.f32.mrf.mxu0
        %580 = vdwg.mxu0
        %581 = vrot.lane.b32.xlu0 %v524, 120
        %v582 = vpop.permute.xlu0 %581
        %583 = vrot.lane.b32.xlu0 %v524, 88
        %v584 = vpop.permute.xlu0 %583
        %v586 = vsel %vm527, %v582, 0
        %v589 = vsel %vm527, %v584, 0
        %591 = vmatpush.bf16.xpose.msra.mxu0 0
        %592 = vmatpush.bf16.xpose.msra.mxu0 0
        %593 = vmatpush.bf16.xpose.msra.mxu0 0
        %594 = vmatpush.bf16.xpose.msra.mxu0 0
        %595 = vmatpush.bf16.xpose.msra.mxu0 0
        %596 = vmatpush.bf16.xpose.msra.mxu0 0
        %597 = vmatpush.bf16.xpose.msra.mxu0 0
        %598 = vmatpush.bf16.xpose.msra.mxu0 %v589
        %599 = vmatmul.bf16.gmra.mxu0 %v586
        %v600 = vpop.f32.mrf.mxu0
        %v601 = vadd.f32 0.0, %v600
        %v602 = vpop.f32.mrf.mxu0
        %603 = vdwg.mxu0
        %v604 = vsel %vm527, %v601, -inf
        %605 = vmax.xlane.f32.xlu0 %v604
        %v606 = vpop.xlane.xlu0 %605
        %v607 = vsub.f32 %v601, %v606
        %v608 = vmul.f32 %v607, 1.442695
        %v609 = vpow.pop %v608
        %v610 = vsel %vm527, %v609, 0.0
        %611 = vadd.xlane.f32.xlu0 %v610
        %v612 = vpop.xlane.xlu0 %611
        %v613 = vrcp.pop %v612
        %v614 = vmul.f32 %v609, %v613
        %v615 = vpack.c.bf16 %v614, %v614
        %616 = vrot.lane.b32.xlu0 %v524, 56
        %v617 = vpop.permute.xlu0 %616
        %v619 = vsel %vm527, %v615, 0
        %v622 = vsel %vm564, %v617, 0
        %624 = vmatpush.bf16.msra.mxu0 0
        %625 = vmatpush.bf16.msra.mxu0 0
        %626 = vmatpush.bf16.msra.mxu0 0
        %627 = vmatpush.bf16.msra.mxu0 0
        %628 = vmatpush.bf16.msra.mxu0 0
        %629 = vmatpush.bf16.msra.mxu0 0
        %630 = vmatpush.bf16.msra.mxu0 0
        %631 = vmatpush.bf16.msra.mxu0 %v622
        %632 = vmatmul.bf16.gmra.mxu0 %v619
        %v633 = vpop.f32.mrf.mxu0
        %v634 = vadd.f32 0.0, %v633
        %v635 = vpop.f32.mrf.mxu0
        %636 = vdwg.mxu0
        %637 = vrot.lane.b32.xlu0 %v524, 112
        %v638 = vpop.permute.xlu0 %637
        %639 = vrot.lane.b32.xlu0 %v524, 80
        %v640 = vpop.permute.xlu0 %639
        %v642 = vsel %vm527, %v638, 0
        %v645 = vsel %vm527, %v640, 0
        %647 = vmatpush.bf16.xpose.msra.mxu0 0
        %648 = vmatpush.bf16.xpose.msra.mxu0 0
        %649 = vmatpush.bf16.xpose.msra.mxu0 0
        %650 = vmatpush.bf16.xpose.msra.mxu0 0
        %651 = vmatpush.bf16.xpose.msra.mxu0 0
        %652 = vmatpush.bf16.xpose.msra.mxu0 0
        %653 = vmatpush.bf16.xpose.msra.mxu0 0
        %654 = vmatpush.bf16.xpose.msra.mxu0 %v645
        %655 = vmatmul.bf16.gmra.mxu0 %v642
        %v656 = vpop.f32.mrf.mxu0
        %v657 = vadd.f32 0.0, %v656
        %v658 = vpop.f32.mrf.mxu0
        %659 = vdwg.mxu0
        %v660 = vsel %vm527, %v657, -inf
        %661 = vmax.xlane.f32.xlu0 %v660
        %v662 = vpop.xlane.xlu0 %661
        %v663 = vsub.f32 %v657, %v662
        %v664 = vmul.f32 %v663, 1.442695
        %v665 = vpow.pop %v664
        %v666 = vsel %vm527, %v665, 0.0
        %667 = vadd.xlane.f32.xlu0 %v666
        %v668 = vpop.xlane.xlu0 %667
        %v669 = vrcp.pop %v668
        %v670 = vmul.f32 %v665, %v669
        %v671 = vpack.c.bf16 %v670, %v670
        %672 = vrot.lane.b32.xlu0 %v524, 48
        %v673 = vpop.permute.xlu0 %672
        %v675 = vsel %vm527, %v671, 0
        %v678 = vsel %vm564, %v673, 0
        %680 = vmatpush.bf16.msra.mxu0 0
        %681 = vmatpush.bf16.msra.mxu0 0
        %682 = vmatpush.bf16.msra.mxu0 0
        %683 = vmatpush.bf16.msra.mxu0 0
        %684 = vmatpush.bf16.msra.mxu0 0
        %685 = vmatpush.bf16.msra.mxu0 0
        %686 = vmatpush.bf16.msra.mxu0 0
        %687 = vmatpush.bf16.msra.mxu0 %v678
        %688 = vmatmul.bf16.gmra.mxu0 %v675
        %v689 = vpop.f32.mrf.mxu0
        %v690 = vadd.f32 0.0, %v689
        %v691 = vpop.f32.mrf.mxu0
        %692 = vdwg.mxu0
        %693 = vrot.lane.b32.xlu0 %v524, 104
        %v694 = vpop.permute.xlu0 %693
        %695 = vrot.lane.b32.xlu0 %v524, 72
        %v696 = vpop.permute.xlu0 %695
        %v698 = vsel %vm527, %v694, 0
        %v701 = vsel %vm527, %v696, 0
        %703 = vmatpush.bf16.xpose.msra.mxu0 0
        %704 = vmatpush.bf16.xpose.msra.mxu0 0
        %705 = vmatpush.bf16.xpose.msra.mxu0 0
        %706 = vmatpush.bf16.xpose.msra.mxu0 0
        %707 = vmatpush.bf16.xpose.msra.mxu0 0
        %708 = vmatpush.bf16.xpose.msra.mxu0 0
        %709 = vmatpush.bf16.xpose.msra.mxu0 0
        %710 = vmatpush.bf16.xpose.msra.mxu0 %v701
        %711 = vmatmul.bf16.gmra.mxu0 %v698
        %v712 = vpop.f32.mrf.mxu0
        %v713 = vadd.f32 0.0, %v712
        %v714 = vpop.f32.mrf.mxu0
        %715 = vdwg.mxu0
        %v716 = vsel %vm527, %v713, -inf
        %717 = vmax.xlane.f32.xlu0 %v716
        %v718 = vpop.xlane.xlu0 %717
        %v719 = vsub.f32 %v713, %v718
        %v720 = vmul.f32 %v719, 1.442695
        %v721 = vpow.pop %v720
        %v722 = vsel %vm527, %v721, 0.0
        %723 = vadd.xlane.f32.xlu0 %v722
        %v724 = vpop.xlane.xlu0 %723
        %v725 = vrcp.pop %v724
        %v726 = vmul.f32 %v721, %v725
        %v727 = vpack.c.bf16 %v726, %v726
        %728 = vrot.lane.b32.xlu0 %v524, 40
        %v729 = vpop.permute.xlu0 %728
        %v731 = vsel %vm527, %v727, 0
        %v734 = vsel %vm564, %v729, 0
        %736 = vmatpush.bf16.msra.mxu0 0
        %737 = vmatpush.bf16.msra.mxu0 0
        %738 = vmatpush.bf16.msra.mxu0 0
        %739 = vmatpush.bf16.msra.mxu0 0
        %740 = vmatpush.bf16.msra.mxu0 0
        %741 = vmatpush.bf16.msra.mxu0 0
        %742 = vmatpush.bf16.msra.mxu0 0
        %743 = vmatpush.bf16.msra.mxu0 %v734
        %744 = vmatmul.bf16.gmra.mxu0 %v731
        %v745 = vpop.f32.mrf.mxu0
        %v746 = vadd.f32 0.0, %v745
        %v747 = vpop.f32.mrf.mxu0
        %748 = vdwg.mxu0
        %750 = vrot.lane.b32.xlu0 %v634, 8
        %v751 = vpop.permute.xlu0 %750
        %754 = vrot.lane.b32.xlu0 %v690, 16
        %v755 = vpop.permute.xlu0 %754
        %758 = vrot.lane.b32.xlu0 %v746, 24
        %v759 = vpop.permute.xlu0 %758
        %v761 = vsel %vm527, %v578, %v751
        %vm762 = vcmask 130048
        %v763 = vsel %vm762, %v761, %v755
        %vm764 = vcmask 195584
        %v765 = vsel %vm764, %v763, %v759
        %v766 = vld [vmem:[#allocation2] sm:$0xff]
        %v767 = vpack.c.bf16 %v765, %v765
        %v768 = vld [vmem:[%s5] sm:$0xf]
        %v769 = vld [vmem:[%s5 + $0x4] sm:$0xf]
        %v770 = vld [vmem:[%s5 + $0x8] sm:$0xf]
        %v771 = vld [vmem:[%s5 + $0xc] sm:$0xf]
        %v776 = vunpack.c.l.b16 %v768
        %v777 = vunpack.c.l.b16 %v769
        %v778 = vunpack.c.l.b16 %v770
        %v779 = vunpack.c.l.b16 %v771
        %v780 = vpack.c.b16 %v777, %v776
        %v781 = vpack.c.b16 %v779, %v778
        %v785 = vsel %vm440, %v767, 0
        %787 = vmatpush.bf16.msra.mxu0 0
        %788 = vmatpush.bf16.msra.mxu0 0
        %789 = vmatpush.bf16.msra.mxu0 0
        %790 = vmatpush.bf16.msra.mxu0 0
        %791 = vmatpush.bf16.msra.mxu0 0
        %792 = vmatpush.bf16.msra.mxu0 0
        %793 = vmatpush.bf16.msra.mxu0 %v781
        %794 = vmatpush.bf16.msra.mxu0 %v780
        %795 = vmatmul.bf16.gmra.mxu0 %v785
        %v796 = vpop.f32.mrf.mxu0
        %v797 = vadd.f32 0.0, %v796
        %v798 = vpop.f32.mrf.mxu0
        %799 = vdwg.mxu0
        %v800 = vadd.f32 %v766, %v797
        %801 = vst.msk [vmem:[#allocation2] sm:$0xff] %vm440, %v800
        %v802 = vld [vmem:[#allocation2] sm:$0xff]
        %v803 = vld [vmem:[%s7] sm:$0x1]
        %v804 = vld [vmem:[%s8] sm:$0x1]
        %v805 = vsel %vm440, %v802, 0.0
        %806 = vadd.xlane.f32.xlu0 %v805
        %v807 = vpop.xlane.xlu0 %806
        %v808 = vmul.f32 %v807, %v450
        %v809 = vsub.f32 %v802, %v808
        %v810 = vmul.f32 %v809, %v809
        %v811 = vsel %vm440, %v810, 0.0
        %812 = vadd.xlane.f32.xlu0 %v811
        %v813 = vpop.xlane.xlu0 %812
        %v814 = vmul.f32 %v813, %v450
        %v815 = vadd.f32 %v814, 1e-06
        %v816 = vrsqrt.pop %v815
        %v817 = vmul.f32 %v816, %v815
        %v818 = vmul.f32 %v817, %v816
        %v819 = vmul.f32 0.5, %v818
        %v820 = vsub.f32 1.5, %v819
        %v821 = vmul.f32 %v816, %v820
        %vm822 = vweird.f32 %v815
        %vm823 = vweird.f32 %v816
        %vm824 = vmor %vm822, %vm823
        %v825 = vsel %vm824, %v816, %v821
        %v826 = vmul.f32 %v809, %v825
        %v828 = vperm.slane %v803, 0
        %v830 = vmul.f32 %v826, %v828
        %v832 = vperm.slane %v804, 0
        %v834 = vadd.f32 %v830, %v832
        %v835 = vpack.c.bf16 %v834, %v834
        %v836 = vld [vmem:[%s9] sm:$0xf]
        %v837 = vld [vmem:[%s9 + $0x4] sm:$0xf]
        %v838 = vld [vmem:[%s9 + $0x8] sm:$0xf]
        %v839 = vld [vmem:[%s9 + $0xc] sm:$0xf]
        %v840 = vld [vmem:[%s10] sm:$0x1]
        %v842 = vperm.slane %v840, 0
        %v848 = vunpack.c.l.b16 %v836
        %v849 = vunpack.c.l.b16 %v837
        %v850 = vunpack.c.l.b16 %v838
        %v851 = vunpack.c.l.b16 %v839
        %v852 = vpack.c.b16 %v849, %v848
        %v853 = vpack.c.b16 %v851, %v850
        %v857 = vsel %vm440, %v835, 0
        %859 = vmatpush.bf16.msra.mxu0 0
        %860 = vmatpush.bf16.msra.mxu0 0
        %861 = vmatpush.bf16.msra.mxu0 0
        %862 = vmatpush.bf16.msra.mxu0 0
        %863 = vmatpush.bf16.msra.mxu0 0
        %864 = vmatpush.bf16.msra.mxu0 0
        %865 = vmatpush.bf16.msra.mxu0 %v853
        %866 = vmatpush.bf16.msra.mxu0 %v852
        %867 = vmatmul.bf16.gmra.mxu0 %v857
        %v868 = vpop.f32.mrf.mxu0
        %v869 = vadd.f32 %v842, %v868
        %v870 = vpop.f32.mrf.mxu0
        %871 = vdwg.mxu0
        %v872 = vmul.f32 %v869, 0.5
        %v873 = vmul.f32 %v869, 0.70710677
        %v874 = vand.u32 2147483647, %v873
        %v875 = vmul.f32 %v874, 0.3275911
        %v876 = vadd.f32 %v875, 1.0
        %v877 = vrcp.pop %v876
        %v878 = vmul.f32 %v876, %v877
        %v879 = vsub.f32 1.0, %v878
        %v880 = vmul.f32 %v877, %v879
        %v881 = vadd.f32 %v877, %v880
        %vm882 = vweird.f32 %v876
        %vm883 = vweird.f32 %v877
        %vm884 = vmor %vm882, %vm883
        %v885 = vsel %vm884, %v877, %v881
        %v886 = vand.u32 2147483647, %v876
        %vm887 = vcmp.eq.f32.partialorder %v886, 8.507059e+37
        %v888 = vand.u32 %v876, 2147483648
        %v889 = vor.u32 1.1754944e-38, %v888
        %v890 = vsel %vm887, %v889, %v885
        %v891 = vmul.f32 1.0, %v890
        %v892 = vmul.f32 %v891, 1.0614054
        %v893 = vsub.f32 %v892, 1.4531521
        %v894 = vmul.f32 %v893, %v891
        %v895 = vadd.f32 %v894, 1.4214138
        %v896 = vmul.f32 %v895, %v891
        %v897 = vsub.f32 %v896, 0.28449672
        %v898 = vmul.f32 %v897, %v891
        %v899 = vadd.f32 %v898, 0.2548296
        %v900 = vmul.f32 %v899, %v891
        %v901 = vsub.f32 0.0, %v874
        %v902 = vmul.f32 %v901, %v874
        %v903 = vmul.f32 %v902, 1.442695
        %v904 = vpow.pop %v903
        %v905 = vmul.f32 %v900, %v904
        %v906 = vsub.f32 1.0, %v905
        %vm907 = vcmp.ge.f32.partialorder %v873, 0.0
        %v908 = vsub.f32 0.0, %v906
        %v909 = vsel %vm907, %v906, %v908
        %v910 = vadd.f32 %v909, 1.0
        %v911 = vmul.f32 %v872, %v910
        %v912 = vpack.c.bf16 %v911, %v911
        %v913 = vld [vmem:[%s11] sm:$0xf]
        %v914 = vld [vmem:[%s11 + $0x4] sm:$0xf]
        %v915 = vld [vmem:[%s11 + $0x8] sm:$0xf]
        %v916 = vld [vmem:[%s11 + $0xc] sm:$0xf]
        %v917 = vld [vmem:[%s11 + $0x10] sm:$0xf]
        %v918 = vld [vmem:[%s11 + $0x14] sm:$0xf]
        %v919 = vld [vmem:[%s11 + $0x18] sm:$0xf]
        %v920 = vld [vmem:[%s11 + $0x1c] sm:$0xf]
        %v921 = vld [vmem:[%s11 + $0x20] sm:$0xf]
        %v922 = vld [vmem:[%s11 + $0x24] sm:$0xf]
        %v923 = vld [vmem:[%s11 + $0x28] sm:$0xf]
        %v924 = vld [vmem:[%s11 + $0x2c] sm:$0xf]
        %v925 = vld [vmem:[%s11 + $0x30] sm:$0xf]
        %v926 = vld [vmem:[%s11 + $0x34] sm:$0xf]
        %v927 = vld [vmem:[%s11 + $0x38] sm:$0xf]
        %v928 = vld [vmem:[%s11 + $0x3c] sm:$0xf]
        %v945 = vunpack.c.l.b16 %v913
        %v946 = vunpack.c.l.b16 %v914
        %v947 = vunpack.c.l.b16 %v915
        %v948 = vunpack.c.l.b16 %v916
        %v949 = vunpack.c.l.b16 %v917
        %v950 = vunpack.c.l.b16 %v918
        %v951 = vunpack.c.l.b16 %v919
        %v952 = vunpack.c.l.b16 %v920
        %v953 = vunpack.c.l.b16 %v921
        %v954 = vunpack.c.l.b16 %v922
        %v955 = vunpack.c.l.b16 %v923
        %v956 = vunpack.c.l.b16 %v924
        %v957 = vunpack.c.l.b16 %v925
        %v958 = vunpack.c.l.b16 %v926
        %v959 = vunpack.c.l.b16 %v927
        %v960 = vunpack.c.l.b16 %v928
        %v961 = vpack.c.b16 %v946, %v945
        %v962 = vpack.c.b16 %v948, %v947
        %v963 = vpack.c.b16 %v950, %v949
        %v964 = vpack.c.b16 %v952, %v951
        %v965 = vpack.c.b16 %v954, %v953
        %v966 = vpack.c.b16 %v956, %v955
        %v967 = vpack.c.b16 %v958, %v957
        %v968 = vpack.c.b16 %v960, %v959
        %977 = vmatpush.bf16.msra.mxu0 %v968
        %978 = vmatpush.bf16.msra.mxu0 %v967
        %979 = vmatpush.bf16.msra.mxu0 %v966
        %980 = vmatpush.bf16.msra.mxu0 %v965
        %981 = vmatpush.bf16.msra.mxu0 %v964
        %982 = vmatpush.bf16.msra.mxu0 %v963
        %983 = vmatpush.bf16.msra.mxu0 %v962
        %984 = vmatpush.bf16.msra.mxu0 %v961
        %985 = vmatmul.bf16.gmra.mxu0 %v912
        %v986 = vpop.f32.mrf.mxu0
        %v987 = vadd.f32 0.0, %v986
        %v988 = vpop.f32.mrf.mxu0
        %989 = vdwg.mxu0
        %v990 = vadd.f32 %v802, %v987
        %991 = vst.msk [vmem:[#allocation2] sm:$0xff] %vm440, %v990
        %v992 = vld [vmem:[#allocation2] sm:$0xff]
        %v993 = vld [vmem:[%s12] sm:$0x1]
        %v995 = vperm.slane %v993, 0
        %v997 = vadd.f32 %v992, %v995
        %998 = vst.msk [vmem:[%s431] sm:$0xff] %vm440, %v997
        %s999 = sand.u32 %s313, 1
        %s1000 = scalar_lea.sflag [#allocation4], %s999
        %s1001 = sand.u32 %s313, 1
        %s1002 = smul.addr %s1001, 8
        %s1003 = scalar_lea.vmem [#allocation3], %s1002
        // Predicated region
        $region73: #{tpu_custom_call.1} parent=71 // pred_check
          %p1004 = pneg %p323
        $region74: #{tpu_custom_call.1} parent=71 // pred_check_branch
          %1006 = sbr.rel (%p1004) target = $region76
        $region75: #{tpu_custom_call.1} parent=71 // pred_region
          %1008 = vsyncadd %s1000, 0
          %s1009 = smul.addr %s27, 8
          %s1010 = scalar_lea.hbm %s13, %s1009
          %s1012 = sshll.u32 %s1003, 4
          %s1013 = int_to_ptr.vmem [resolvable:$true] %s1012
          %s1014 = sshll.u32 %s1010, 4
          %s1015 = int_to_ptr.hbm [resolvable:$true] %s1014
          %1017 = dma.vmem_to_hbm [thread:$0]  %s1013, 128, %s1015, %s1000
        $region76: #{tpu_custom_call.1} parent=71 // pred_fallthru
          _
      $region72: #{tpu_custom_call.1} parent=5 // pred_fallthru
        _
      %p1018 = scmp.le.s32.totalorder 2, %s22
      // Predicated region
      $region77: #{tpu_custom_call.1} parent=5 // pred_check
        %p1019 = pneg %p1018
      $region78: #{tpu_custom_call.1} parent=5 // pred_check_branch
        %1021 = sbr.rel (%p1019) target = $region80
      $region79: #{tpu_custom_call.1} parent=5 // pred_region
        %s1022 = ssub.s32 %s22, 2
        // Predicated region
        $region81: #{tpu_custom_call.1} parent=79 // pred_check
          %p1023 = pneg %p329
        $region82: #{tpu_custom_call.1} parent=79 // pred_check_branch
          %1025 = sbr.rel (%p1023) target = $region84
        $region83: #{tpu_custom_call.1} parent=79 // pred_region
          %s1026 = sand.u32 %s314, 1
          %s1027 = scalar_lea.sflag [#allocation4], %s1026
          %s1028 = sand.u32 %s314, 1
          %s1029 = smul.addr %s1028, 8
          %s1030 = scalar_lea.vmem [#allocation3], %s1029
          %1032 = dma.done %s1027, 128
        $region84: #{tpu_custom_call.1} parent=79 // pred_fallthru
          _
      $region80: #{tpu_custom_call.1} parent=5 // pred_fallthru
        _
    $region6: #{tpu_custom_call.1} parent=1 // loop_footer
      %s26 = sadd.s32 1, %s22
    $region7: #{tpu_custom_call.1} parent=1 // loop_footer_branch
      %21 = sbr.rel target = $region3
    $region8: #{tpu_custom_call.1} parent=1 // loop_exit
      _
    %1033 = vsyncpa [#allocation4], 1
    %s1034 = scalar_lea.sflag [#allocation4], 1
    %1035 = vsyncpa %s1034, 1

</llo_original>
